<compile_context>
chip_gen: v7x
topology: tpu7x:2x2x1
jax: 0.10.0
libtpu: 0.0.40
codegen_flags: <defaults>
</compile_context>

<pallas_src>
import functools

import jax
import jax.numpy as jnp
from jax import lax
from jax.experimental import pallas as pl
from jax.experimental.pallas import tpu as pltpu


def _attention_kernel(x_ref, wqv_ref, bqv_ref, wt_ref, bt_ref,
                      y_ref, stats_ref, *, approx_recip):
    """TB batches per step: fused q/v 1x1 conv -> energy -> softmax ->
    column-normalized value mix -> trans_conv.  MXU operands in the compute
    dtype (= weight dtype), accumulation in f32."""
    f32 = jnp.float32
    cdt = wqv_ref.dtype
    TB, N, C = x_ref.shape

    # Cast x to the compute dtype inside VMEM (hidden under the input DMA).
    x2 = x_ref[...].astype(cdt).reshape(TB * N, C)                 # (TB*N, C)

    # Fused 1x1 convs: [Xq | Xv | 1] = x @ [Wq^T | Wv^T | 0] + [0 | bv | 1].
    qv = jnp.dot(x2, wqv_ref[...], preferred_element_type=f32) + bqv_ref[...]
    xq = qv[:, :C].astype(cdt).reshape(TB, N, C)
    xv1 = qv[:, C:].astype(cdt).reshape(TB, N, C + 1)              # last col == 1

    # energy[b, q, k] = sum_c xq[b,q,c] * xq[b,k,c]; the grouped (shared
    # weight) q/k conv is folded into a block-diagonal Wq, so this equals the
    # per-group sum of Q_g @ Q_g^T in the reference.
    energy = lax.dot_general(xq, xq, (((2,), (2,)), ((0,), (0,))),
                             preferred_element_type=f32)           # (TB, N, N)

    # Row softmax over keys (f32); normalizer via the EUP reciprocal.
    m = jnp.max(energy, axis=-1, keepdims=True)
    p = jnp.exp(energy - m)
    rowsum = jnp.sum(p, axis=-1, keepdims=True)
    attn = p * pl.reciprocal(rowsum, approx=approx_recip)

    # One batched matmul yields both the value mix and the column sums:
    # mix[b, m, :] = sum_q attn[b, q, m] * [xv | 1][b, q, :].
    attn_c = attn.astype(cdt)
    mix = lax.dot_general(attn_c, xv1, (((1,), (1,)), ((0,), (0,))),
                          preferred_element_type=f32)              # (TB, N, C+1)
    colsum = mix[:, :, C:]                                         # (TB, N, 1)
    x_r = mix[:, :, :C] * pl.reciprocal(1e-9 + colsum, approx=approx_recip)

    # trans_conv (1x1 conv with bias) as one flattened matmul.
    y = jnp.dot(x_r.reshape(TB * N, C).astype(cdt), wt_ref[...],
                preferred_element_type=f32) + bt_ref[...]          # (TB*N, C) f32

    # TODO(synk): a lane-dense (rows, 128) reshape of the y store would avoid
    # masked 32-lane partial stores, but requires Mosaic minor-dim reshape
    # support; y is stored in the compute dtype instead to halve writeback.
    y_ref[...] = y.reshape(TB, N, C).astype(y_ref.dtype)

    # Packed per-block BatchNorm partial sums (f32); global reduce is outside.
    stats_ref[0:1, :] = jnp.sum(y, axis=0, keepdims=True)
    stats_ref[1:2, :] = jnp.sum(y * y, axis=0, keepdims=True)


def _bn_act_residual_kernel(y_ref, x_ref, scale_ref, shift_ref, o_ref):
    """Lane-dense BatchNorm affine + ReLU + residual add (f32 math)."""
    yn = y_ref[...].astype(jnp.float32) * scale_ref[...] + shift_ref[...]
    o_ref[...] = x_ref[...] + jnp.maximum(yn, 0.0)


def _pick_tb(B, N, C):
    """Batches per pass-1 grid step: fill VMEM (conservative for v7x's
    64 MiB/TC) while keeping the grid length >= 2 for megacore sharding."""
    per_batch_bytes = 4 * (3 * N * N + 10 * N * (C + 2))   # f32 temporaries
    budget = 24 * 1024 * 1024
    tb = max(1, min(B, budget // max(per_batch_bytes, 1)))
    if B >= 2:
        tb = min(tb, max(1, B // 2))        # grid >= 2 so v7x uses both TCs
    while B % tb != 0:
        tb -= 1
    return tb


@functools.partial(jax.jit,
                   static_argnames=("gp", "compute_dtype", "pass2_min_bytes"))
def g_transformer_forward(x, wq_grouped, wv, bv, wt, bt, gamma, beta, *,
                          gp, compute_dtype=jnp.bfloat16,
                          pass2_min_bytes=256 * 1024):
    """x: (B, N, C) float32.  wq_grouped: (C, C//gp) grouped-conv weight with
    the kernel dim squeezed.  Returns (B, N, C) float32."""
    f32 = jnp.float32
    B, N, C = x.shape
    assert C % gp == 0
    d = C // gp
    cdt = compute_dtype
    x = x.astype(f32)

    # Grouped (shared-weight) q/k conv folded into a block-diagonal (C, C)
    # weight so energy = Xq @ Xq^T equals the per-group sum in the reference.
    wq_full = jnp.zeros((C, C), f32)
    for g in range(gp):
        wq_full = wq_full.at[g * d:(g + 1) * d, g * d:(g + 1) * d].set(
            wq_grouped[g * d:(g + 1) * d, :].astype(f32))

    # Fused [Wq^T | Wv^T | 0] weight and [0 | bv | 1] bias row: one matmul in
    # the kernel produces Xq, Xv and the ones column for the column sums.
    wqv = jnp.concatenate(
        [wq_full.T, wv.astype(f32).T, jnp.zeros((C, 1), f32)], axis=1
    ).astype(cdt)                                                  # (C, 2C+1)
    bqv = jnp.concatenate(
        [jnp.zeros((C,), f32), bv.astype(f32), jnp.ones((1,), f32)]
    ).reshape(1, 2 * C + 1)
    wt_t = wt.astype(f32).T.astype(cdt)                            # (C, C)
    bt2 = bt.reshape(1, C).astype(f32)

    TB = _pick_tb(B, N, C)
    nblk = B // TB
    cdt_bytes = jnp.dtype(cdt).itemsize

    flops = (2 * B * N * C * (2 * C + 1) + 2 * B * N * N * C
             + 2 * B * N * N * (C + 1) + 2 * B * N * C * C)
    bytes_accessed = (4 * B * N * C                    # x read (f32)
                      + cdt_bytes * B * N * C          # y write (compute dtype)
                      + 4 * nblk * 2 * C               # packed BN partials
                      + cdt_bytes * (C * (2 * C + 1) + C * C)
                      + 4 * (3 * C + 1))
    cost = pl.CostEstimate(flops=flops, transcendentals=B * N * (N + 2),
                           bytes_accessed=bytes_accessed)

    kernel = functools.partial(_attention_kernel,
                               approx_recip=(cdt != jnp.float32))

    # ---------------- Pass 1: attention + trans_conv, TB batches / step -----
    # TODO(synk): for very large N additionally tile the key axis (flash-style
    # online softmax) so the (N, N) block is never resident; this is needed
    # earlier on v7x (64 MiB VMEM) than on v5e/v6e (128 MiB).
    y, stats = pl.pallas_call(
        kernel,
        grid=(nblk,),
        in_specs=[
            pl.BlockSpec((TB, N, C), lambda b: (b, 0, 0)),       # x (f32)
            pl.BlockSpec((C, 2 * C + 1), lambda b: (0, 0)),      # [Wq|Wv|0]^T
            pl.BlockSpec((1, 2 * C + 1), lambda b: (0, 0)),      # [0|bv|1]
            pl.BlockSpec((C, C), lambda b: (0, 0)),              # Wt^T
            pl.BlockSpec((1, C), lambda b: (0, 0)),              # bt
        ],
        out_specs=(
            pl.BlockSpec((TB, N, C), lambda b: (b, 0, 0)),       # y (cdt)
            pl.BlockSpec((None, 2, C), lambda b: (b, 0, 0)),     # [sum; sumsq]
        ),
        out_shape=(
            jax.ShapeDtypeStruct((B, N, C), cdt),
            jax.ShapeDtypeStruct((nblk, 2, C), f32),
        ),
        compiler_params=pltpu.CompilerParams(
            dimension_semantics=("parallel",),      # megacore over batch blocks
            vmem_limit_bytes=48 * 1024 * 1024),     # headroom on v7x (64 MiB)
        cost_estimate=cost,
    )(x, wqv, bqv, wt_t, bt2)

    # ---- Global training-mode BatchNorm stats (biased variance, eps=1e-5) --
    cnt = float(B * N)
    mu = jnp.sum(stats[:, 0, :], axis=0) / cnt
    ex2 = jnp.sum(stats[:, 1, :], axis=0) / cnt
    var = jnp.maximum(ex2 - mu * mu, 0.0)
    inv_std = lax.rsqrt(var + 1e-5)
    scale = gamma.astype(f32) * inv_std              # (C,)
    shift = beta.astype(f32) - mu * scale            # (C,)
    # TODO(synk): nn.BatchNorm1d running_mean/running_var buffer updates (a
    # module side effect) are not modeled; only the training-mode forward is.

    # ---------------- Pass 2: BN-affine + ReLU + residual -------------------
    total = B * N * C
    if total * 4 < pass2_min_bytes:
        # Tiny problem: custom-call overhead would dominate -> let XLA fuse.
        yn = y.astype(f32) * scale.reshape(1, 1, C) + shift.reshape(1, 1, C)
        return x + jnp.maximum(yn, 0.0)

    # Lane-dense (rows, 128) view so loads/stores are unmasked full vregs
    # (C=32 alone would waste 3/4 of every vreg and force masked stores).
    if C <= 128 and 128 % C == 0 and total % 128 == 0:
        L = 128
    else:
        L = C
    R = total // L
    rep = L // C
    scale_row = jnp.tile(scale, rep).reshape(1, L)
    shift_row = jnp.tile(shift, rep).reshape(1, L)
    x_flat = x.reshape(R, L)
    y_flat = y.reshape(R, L)
    TM = R if R <= 2048 else 2048                    # mem-bound: fat blocks

    out_flat = pl.pallas_call(
        _bn_act_residual_kernel,
        grid=(pl.cdiv(R, TM),),
        in_specs=[
            pl.BlockSpec((TM, L), lambda r: (r, 0)),     # y (compute dtype)
            pl.BlockSpec((TM, L), lambda r: (r, 0)),     # x residual (f32)
            pl.BlockSpec((1, L), lambda r: (0, 0)),      # scale
            pl.BlockSpec((1, L), lambda r: (0, 0)),      # shift
        ],
        out_specs=pl.BlockSpec((TM, L), lambda r: (r, 0)),
        out_shape=jax.ShapeDtypeStruct((R, L), f32),
        compiler_params=pltpu.CompilerParams(
            dimension_semantics=("parallel",)),
    )(y_flat, x_flat, scale_row, shift_row)

    return out_flat.reshape(B, N, C)


def g_transformer_reference(x, wq_grouped, wv, bv, wt, bt, gamma, beta, gp):
    """Pure-JAX f32 reference mirroring the PyTorch forward (NCL internally)."""
    B, N, C = x.shape
    d = C // gp
    xt = jnp.transpose(x, (0, 2, 1))                        # (B, C, N)
    xg = xt.reshape(B, gp, d, N)
    wqg = wq_grouped.reshape(gp, d, d)                      # (gp, out, in)
    xq = jnp.einsum('goi,bgin->bgon', wqg, xg)              # (B, gp, d, N)
    xk = xq                                                 # shared weight
    xq_p = jnp.transpose(xq, (0, 1, 3, 2))                  # (B, gp, N, d)
    xv = jnp.einsum('oc,bcn->bon', wv, xt) + bv[None, :, None]
    energy = jnp.einsum('bgnd,bgdm->bgnm', xq_p, xk)
    energy = jnp.sum(energy, axis=1)                        # (B, N, N)
    attn = jax.nn.softmax(energy, axis=-1)
    attn = attn / (1e-9 + jnp.sum(attn, axis=1, keepdims=True))
    x_r = jnp.einsum('bcn,bnm->bcm', xv, attn)              # (B, C, N)
    y = jnp.einsum('oc,bcn->bon', wt, x_r) + bt[None, :, None]
    mu = jnp.mean(y, axis=(0, 2), keepdims=True)
    var = jnp.mean((y - mu) ** 2, axis=(0, 2), keepdims=True)
    yn = (y - mu) / jnp.sqrt(var + 1e-5)
    yn = yn * gamma[None, :, None] + beta[None, :, None]
    out = xt + jnp.maximum(yn, 0.0)
    return jnp.transpose(out, (0, 2, 1))


if __name__ == "__main__":
    B, N, C, gp = 8, 16, 32, 4
    d = C // gp

    key = jax.random.PRNGKey(0)
    k_x, k_q, k_v, k_bv, k_t, k_bt = jax.random.split(key, 6)

    x = jax.random.normal(k_x, (B, N, C), dtype=jnp.float32)
    wq_grouped = jax.random.normal(k_q, (C, d), jnp.float32) * (1.0 / jnp.sqrt(d))
    wv = jax.random.normal(k_v, (C, C), jnp.float32) * (1.0 / jnp.sqrt(C))
    bv = jax.random.normal(k_bv, (C,), jnp.float32) * 0.1
    wt = jax.random.normal(k_t, (C, C), jnp.float32) * (1.0 / jnp.sqrt(C))
    bt = jax.random.normal(k_bt, (C,), jnp.float32) * 0.1
    gamma = jnp.ones((C,), jnp.float32)        # BatchNorm default init
    beta = jnp.zeros((C,), jnp.float32)

    ref = jax.block_until_ready(
        g_transformer_reference(x, wq_grouped, wv, bv, wt, bt, gamma, beta, gp))

    # f32 MXU-operand path with the Pallas pass-2 forced: tight check.
    out_f32 = jax.block_until_ready(
        g_transformer_forward(x, wq_grouped, wv, bv, wt, bt, gamma, beta,
                              gp=gp, compute_dtype=jnp.float32,
                              pass2_min_bytes=0))
    assert out_f32.shape == (B, N, C)
    assert jnp.allclose(out_f32, ref, atol=1e-3, rtol=1e-3), \
        "f32 Pallas kernel mismatch vs reference"

    # bf16 fast path (bf16 MXU operands, bf16 y writeback, approx reciprocals,
    # XLA-fused pass 2 at this tiny size): loose smoke-test tolerance.
    out_bf16 = jax.block_until_ready(
        g_transformer_forward(x, wq_grouped, wv, bv, wt, bt, gamma, beta,
                              gp=gp, compute_dtype=jnp.bfloat16))
    assert out_bf16.shape == (B, N, C)
    assert jnp.allclose(out_bf16, ref, atol=1e-1, rtol=1e-1), \
        "bf16 Pallas kernel mismatch vs reference"

    print("KERNEL_OK")
</pallas_src>

<mosaic_0001>
module attributes {stable_mosaic.version = 11 : i64} {
  func.func @_attention_kernel(%arg0: i32, %arg1: memref<4x16x32xf32, #tpu.memory_space<vmem>>, %arg2: memref<32x65xf32, #tpu.memory_space<vmem>>, %arg3: memref<1x65xf32, #tpu.memory_space<vmem>>, %arg4: memref<32x32xf32, #tpu.memory_space<vmem>>, %arg5: memref<1x32xf32, #tpu.memory_space<vmem>>, %arg6: memref<4x16x32xf32, #tpu.memory_space<vmem>>, %arg7: memref<1x2x32xf32, #tpu.memory_space<vmem>>) attributes {dimension_semantics = [#tpu.dimension_semantics<parallel>], iteration_bounds = array<i64: 2>, scalar_prefetch = 0 : i64, scratch_operands = 0 : i64, tpu.core_type = #tpu.core_type<tc>, window_params = [{transform_indices = @transform_0, window_bounds = array<i64: 4, 16, 32>}, {pipeline_mode = #tpu.pipeline_mode<synchronous>, transform_indices = @transform_1, window_bounds = array<i64: 32, 65>}, {pipeline_mode = #tpu.pipeline_mode<synchronous>, transform_indices = @transform_2, window_bounds = array<i64: 1, 65>}, {pipeline_mode = #tpu.pipeline_mode<synchronous>, transform_indices = @transform_3, window_bounds = array<i64: 32, 32>}, {pipeline_mode = #tpu.pipeline_mode<synchronous>, transform_indices = @transform_4, window_bounds = array<i64: 1, 32>}, {transform_indices = @transform_5, window_bounds = array<i64: 4, 16, 32>}, {transform_indices = @transform_6, window_bounds = array<i64: 1, 2, 32>}]} {
    %c0 = arith.constant 0 : index
    %c0_0 = arith.constant 0 : index
    %c0_1 = arith.constant 0 : index
    %0 = vector.load %arg1[%c0, %c0_0, %c0_1] : memref<4x16x32xf32, #tpu.memory_space<vmem>>, vector<4x16x32xf32>
    %1 = vector.shape_cast %0 : vector<4x16x32xf32> to vector<64x32xf32>
    %c0_2 = arith.constant 0 : index
    %c0_3 = arith.constant 0 : index
    %2 = vector.load %arg2[%c0_2, %c0_3] : memref<32x65xf32, #tpu.memory_space<vmem>>, vector<32x65xf32>
    %cst = arith.constant dense<0.000000e+00> : vector<64x65xf32>
    %3 = tpu.matmul %1, %2, %cst {dimension_numbers = #tpu.dot_dimension_numbers<[1], [0], [0], [1], [0, 0, 1, 1], [], []>} : vector<64x32xf32>, vector<32x65xf32>, vector<64x65xf32> -> vector<64x65xf32>
    %c0_4 = arith.constant 0 : index
    %c0_5 = arith.constant 0 : index
    %4 = vector.load %arg3[%c0_4, %c0_5] : memref<1x65xf32, #tpu.memory_space<vmem>>, vector<1x65xf32>
    %5 = vector.broadcast %4 : vector<1x65xf32> to vector<64x65xf32>
    %6 = arith.addf %3, %5 : vector<64x65xf32>
    %7 = vector.extract_strided_slice %6 {offsets = [0, 0], sizes = [64, 32], strides = [1, 1]} : vector<64x65xf32> to vector<64x32xf32>
    %8 = vector.shape_cast %7 : vector<64x32xf32> to vector<4x16x32xf32>
    %9 = vector.extract_strided_slice %6 {offsets = [0, 32], sizes = [64, 33], strides = [1, 1]} : vector<64x65xf32> to vector<64x33xf32>
    %10 = vector.shape_cast %9 : vector<64x33xf32> to vector<4x16x33xf32>
    %cst_6 = arith.constant dense<0.000000e+00> : vector<4x16x16xf32>
    %11 = tpu.matmul %8, %8, %cst_6 {dimension_numbers = #tpu.dot_dimension_numbers<[2], [2], [1], [1], [0, 0, 0, 1, 1, 1], [0], [0]>} : vector<4x16x32xf32>, vector<4x16x32xf32>, vector<4x16x16xf32> -> vector<4x16x16xf32>
    %cst_7 = arith.constant dense<0xFF800000> : vector<4x16xf32>
    %12 = vector.multi_reduction <maximumf>, %11, %cst_7 [2] : vector<4x16x16xf32> to vector<4x16xf32>
    %13 = vector.shape_cast %12 : vector<4x16xf32> to vector<4x16x1xf32>
    %14 = vector.broadcast %13 : vector<4x16x1xf32> to vector<4x16x16xf32>
    %15 = arith.subf %11, %14 : vector<4x16x16xf32>
    %16 = math.exp %15 : vector<4x16x16xf32>
    %cst_8 = arith.constant dense<0.000000e+00> : vector<4x16xf32>
    %17 = vector.multi_reduction <add>, %16, %cst_8 [2] : vector<4x16x16xf32> to vector<4x16xf32>
    %18 = vector.shape_cast %17 : vector<4x16xf32> to vector<4x16x1xf32>
    %19 = tpu.reciprocal %18 : vector<4x16x1xf32> -> vector<4x16x1xf32>
    %20 = vector.broadcast %19 : vector<4x16x1xf32> to vector<4x16x16xf32>
    %21 = arith.mulf %16, %20 : vector<4x16x16xf32>
    %cst_9 = arith.constant dense<0.000000e+00> : vector<4x16x33xf32>
    %22 = tpu.matmul %21, %10, %cst_9 {dimension_numbers = #tpu.dot_dimension_numbers<[1], [1], [2], [2], [0, 0, 0, 2, 1, 2], [0], [0]>} : vector<4x16x16xf32>, vector<4x16x33xf32>, vector<4x16x33xf32> -> vector<4x16x33xf32>
    %23 = vector.extract_strided_slice %22 {offsets = [0, 0, 32], sizes = [4, 16, 1], strides = [1, 1, 1]} : vector<4x16x33xf32> to vector<4x16x1xf32>
    %24 = vector.extract_strided_slice %22 {offsets = [0, 0, 0], sizes = [4, 16, 32], strides = [1, 1, 1]} : vector<4x16x33xf32> to vector<4x16x32xf32>
    %cst_10 = arith.constant 9.99999971E-10 : f32
    %25 = vector.broadcast %cst_10 : f32 to vector<4x16x1xf32>
    %26 = arith.addf %25, %23 : vector<4x16x1xf32>
    %27 = tpu.reciprocal %26 : vector<4x16x1xf32> -> vector<4x16x1xf32>
    %28 = vector.broadcast %27 : vector<4x16x1xf32> to vector<4x16x32xf32>
    %29 = arith.mulf %24, %28 : vector<4x16x32xf32>
    %30 = vector.shape_cast %29 : vector<4x16x32xf32> to vector<64x32xf32>
    %c0_11 = arith.constant 0 : index
    %c0_12 = arith.constant 0 : index
    %31 = vector.load %arg4[%c0_11, %c0_12] : memref<32x32xf32, #tpu.memory_space<vmem>>, vector<32x32xf32>
    %cst_13 = arith.constant dense<0.000000e+00> : vector<64x32xf32>
    %32 = tpu.matmul %30, %31, %cst_13 {dimension_numbers = #tpu.dot_dimension_numbers<[1], [0], [0], [1], [0, 0, 1, 1], [], []>} : vector<64x32xf32>, vector<32x32xf32>, vector<64x32xf32> -> vector<64x32xf32>
    %c0_14 = arith.constant 0 : index
    %c0_15 = arith.constant 0 : index
    %33 = vector.load %arg5[%c0_14, %c0_15] : memref<1x32xf32, #tpu.memory_space<vmem>>, vector<1x32xf32>
    %34 = vector.broadcast %33 : vector<1x32xf32> to vector<64x32xf32>
    %35 = arith.addf %32, %34 : vector<64x32xf32>
    %36 = vector.shape_cast %35 : vector<64x32xf32> to vector<4x16x32xf32>
    %c0_16 = arith.constant 0 : index
    %c0_17 = arith.constant 0 : index
    %c0_18 = arith.constant 0 : index
    %37 = vector.load %arg6[%c0_16, %c0_17, %c0_18] : memref<4x16x32xf32, #tpu.memory_space<vmem>>, vector<4x16x32xf32>
    tpu.vector_store %arg6[%c0_16, %c0_17, %c0_18], %36 {strides = array<i32>} : memref<4x16x32xf32, #tpu.memory_space<vmem>>, vector<4x16x32xf32>,
    %cst_19 = arith.constant dense<0.000000e+00> : vector<32xf32>
    %38 = vector.multi_reduction <add>, %35, %cst_19 [0] : vector<64x32xf32> to vector<32xf32>
    %39 = vector.shape_cast %38 : vector<32xf32> to vector<1x32xf32>
    %c0_20 = arith.constant 0 : index
    %c0_21 = arith.constant 0 : index
    %c0_22 = arith.constant 0 : index
    %40 = vector.load %arg7[%c0_20, %c0_21, %c0_22] : memref<1x2x32xf32, #tpu.memory_space<vmem>>, vector<1x1x32xf32>
    %41 = vector.shape_cast %40 : vector<1x1x32xf32> to vector<1x32xf32>
    %42 = vector.shape_cast %39 : vector<1x32xf32> to vector<1x1x32xf32>
    tpu.vector_store %arg7[%c0_20, %c0_21, %c0_22], %42 {strides = array<i32>} : memref<1x2x32xf32, #tpu.memory_space<vmem>>, vector<1x1x32xf32>,
    %43 = arith.mulf %35, %35 : vector<64x32xf32>
    %cst_23 = arith.constant dense<0.000000e+00> : vector<32xf32>
    %44 = vector.multi_reduction <add>, %43, %cst_23 [0] : vector<64x32xf32> to vector<32xf32>
    %45 = vector.shape_cast %44 : vector<32xf32> to vector<1x32xf32>
    %c0_24 = arith.constant 0 : index
    %c1 = arith.constant 1 : index
    %c0_25 = arith.constant 0 : index
    %46 = vector.load %arg7[%c0_24, %c1, %c0_25] : memref<1x2x32xf32, #tpu.memory_space<vmem>>, vector<1x1x32xf32>
    %47 = vector.shape_cast %46 : vector<1x1x32xf32> to vector<1x32xf32>
    %48 = vector.shape_cast %45 : vector<1x32xf32> to vector<1x1x32xf32>
    tpu.vector_store %arg7[%c0_24, %c1, %c0_25], %48 {strides = array<i32>} : memref<1x2x32xf32, #tpu.memory_space<vmem>>, vector<1x1x32xf32>,
    return
  }
  func.func @transform_0(%arg0: i32) -> (i32, i32, i32) {
    %c0_i32 = arith.constant 0 : i32
    %c0_i32_0 = arith.constant 0 : i32
    %c0_i32_1 = arith.constant 0 : i32
    return %arg0, %c0_i32, %c0_i32_0 : i32, i32, i32
  }
  func.func @transform_1(%arg0: i32) -> (i32, i32) {
    %c0_i32 = arith.constant 0 : i32
    %c0_i32_0 = arith.constant 0 : i32
    %c0_i32_1 = arith.constant 0 : i32
    return %c0_i32, %c0_i32_0 : i32, i32
  }
  func.func @transform_2(%arg0: i32) -> (i32, i32) {
    %c0_i32 = arith.constant 0 : i32
    %c0_i32_0 = arith.constant 0 : i32
    %c0_i32_1 = arith.constant 0 : i32
    return %c0_i32, %c0_i32_0 : i32, i32
  }
  func.func @transform_3(%arg0: i32) -> (i32, i32) {
    %c0_i32 = arith.constant 0 : i32
    %c0_i32_0 = arith.constant 0 : i32
    %c0_i32_1 = arith.constant 0 : i32
    return %c0_i32, %c0_i32_0 : i32, i32
  }
  func.func @transform_4(%arg0: i32) -> (i32, i32) {
    %c0_i32 = arith.constant 0 : i32
    %c0_i32_0 = arith.constant 0 : i32
    %c0_i32_1 = arith.constant 0 : i32
    return %c0_i32, %c0_i32_0 : i32, i32
  }
  func.func @transform_5(%arg0: i32) -> (i32, i32, i32) {
    %c0_i32 = arith.constant 0 : i32
    %c0_i32_0 = arith.constant 0 : i32
    %c0_i32_1 = arith.constant 0 : i32
    return %arg0, %c0_i32, %c0_i32_0 : i32, i32, i32
  }
  func.func @transform_6(%arg0: i32) -> (i32, i32, i32) {
    %c0_i32 = arith.constant 0 : i32
    %c0_i32_0 = arith.constant 0 : i32
    %c0_i32_1 = arith.constant 0 : i32
    return %arg0, %c0_i32, %c0_i32_0 : i32, i32, i32
  }
}

module attributes {stable_mosaic.version = 11 : i64} {
  func.func @_bn_act_residual_kernel(%arg0: i32, %arg1: memref<32x128xf32, #tpu.memory_space<vmem>>, %arg2: memref<32x128xf32, #tpu.memory_space<vmem>>, %arg3: memref<1x128xf32, #tpu.memory_space<vmem>>, %arg4: memref<1x128xf32, #tpu.memory_space<vmem>>, %arg5: memref<32x128xf32, #tpu.memory_space<vmem>>) attributes {dimension_semantics = [#tpu.dimension_semantics<parallel>], iteration_bounds = array<i64: 1>, scalar_prefetch = 0 : i64, scratch_operands = 0 : i64, tpu.core_type = #tpu.core_type<tc>, window_params = [{transform_indices = @transform_0, window_bounds = array<i64: 32, 128>}, {transform_indices = @transform_1, window_bounds = array<i64: 32, 128>}, {pipeline_mode = #tpu.pipeline_mode<synchronous>, transform_indices = @transform_2, window_bounds = array<i64: 1, 128>}, {pipeline_mode = #tpu.pipeline_mode<synchronous>, transform_indices = @transform_3, window_bounds = array<i64: 1, 128>}, {transform_indices = @transform_4, window_bounds = array<i64: 32, 128>}]} {
    %c0 = arith.constant 0 : index
    %c0_0 = arith.constant 0 : index
    %0 = vector.load %arg1[%c0, %c0_0] : memref<32x128xf32, #tpu.memory_space<vmem>>, vector<32x128xf32>
    %c0_1 = arith.constant 0 : index
    %c0_2 = arith.constant 0 : index
    %1 = vector.load %arg3[%c0_1, %c0_2] : memref<1x128xf32, #tpu.memory_space<vmem>>, vector<1x128xf32>
    %2 = vector.broadcast %1 : vector<1x128xf32> to vector<32x128xf32>
    %3 = arith.mulf %0, %2 : vector<32x128xf32>
    %c0_3 = arith.constant 0 : index
    %c0_4 = arith.constant 0 : index
    %4 = vector.load %arg4[%c0_3, %c0_4] : memref<1x128xf32, #tpu.memory_space<vmem>>, vector<1x128xf32>
    %5 = vector.broadcast %4 : vector<1x128xf32> to vector<32x128xf32>
    %6 = arith.addf %3, %5 : vector<32x128xf32>
    %c0_5 = arith.constant 0 : index
    %c0_6 = arith.constant 0 : index
    %7 = vector.load %arg2[%c0_5, %c0_6] : memref<32x128xf32, #tpu.memory_space<vmem>>, vector<32x128xf32>
    %cst = arith.constant 0.000000e+00 : f32
    %8 = vector.broadcast %cst : f32 to vector<32x128xf32>
    %9 = arith.maximumf %6, %8 : vector<32x128xf32>
    %10 = arith.addf %7, %9 : vector<32x128xf32>
    %c0_7 = arith.constant 0 : index
    %c0_8 = arith.constant 0 : index
    %11 = vector.load %arg5[%c0_7, %c0_8] : memref<32x128xf32, #tpu.memory_space<vmem>>, vector<32x128xf32>
    tpu.vector_store %arg5[%c0_7, %c0_8], %10 {strides = array<i32>} : memref<32x128xf32, #tpu.memory_space<vmem>>, vector<32x128xf32>,
    return
  }
  func.func @transform_0(%arg0: i32) -> (i32, i32) {
    %c0_i32 = arith.constant 0 : i32
    %c0_i32_0 = arith.constant 0 : i32
    return %arg0, %c0_i32 : i32, i32
  }
  func.func @transform_1(%arg0: i32) -> (i32, i32) {
    %c0_i32 = arith.constant 0 : i32
    %c0_i32_0 = arith.constant 0 : i32
    return %arg0, %c0_i32 : i32, i32
  }
  func.func @transform_2(%arg0: i32) -> (i32, i32) {
    %c0_i32 = arith.constant 0 : i32
    %c0_i32_0 = arith.constant 0 : i32
    %c0_i32_1 = arith.constant 0 : i32
    return %c0_i32, %c0_i32_0 : i32, i32
  }
  func.func @transform_3(%arg0: i32) -> (i32, i32) {
    %c0_i32 = arith.constant 0 : i32
    %c0_i32_0 = arith.constant 0 : i32
    %c0_i32_1 = arith.constant 0 : i32
    return %c0_i32, %c0_i32_0 : i32, i32
  }
  func.func @transform_4(%arg0: i32) -> (i32, i32) {
    %c0_i32 = arith.constant 0 : i32
    %c0_i32_0 = arith.constant 0 : i32
    return %arg0, %c0_i32 : i32, i32
  }
}

</mosaic_0001>

<llo_original>
// kernel: tile.13
$region0: #{tile.13}
  #allocation0 [shape = 's32[1]{0}', space=sflag, size = 0x4, scoped, tag = 'scoped memory for tile.13']
  %s0 = inlined_call_operand.vmem [shape: f32[32], index: 0, kind: input, shape index: {}]
  %s1 = inlined_call_operand.vmem [shape: f32[4,32], index: 1, kind: output, shape index: {}]
  // Predicated region
  $region2: #{tile.13} parent=0 // pred_check
    _
  $region3: #{tile.13} parent=0 // pred_check_branch
    %3 = sbr.rel (0) target = $region5
  $region4: #{tile.13} parent=0 // pred_region
    _
  $region5: #{tile.13} parent=0 // pred_fallthru
    _
  %v4 = vld [vmem:[%s0] ss:$0 sm:$0xff]
  %5 = vst [vmem:[%s1] sm:$0xf] %v4

// kernel: tile.14
$region0: #{tile.14}
  %s0 = inlined_call_operand.vmem [shape: f32[4,32], index: 0, kind: input, shape index: {}]
  %s1 = inlined_call_operand.vmem [shape: f32[1,128], index: 1, kind: output, shape index: {}]
  $region1: #{tile.14} parent=0
    #allocation0 [shape = 'u8[4096]{0}', space=vmem, size = 0x1000, scoped, tag = 'scoped mem for output reshape']
    #allocation1 [shape = 'u8[4096]{0}', space=vmem, size = 0x1000, scoped, tag = 'scoped mem for input reshape']
    %s3 = sshllo.u32 0, 4
    %v4 = vld [vmem:[%s0] sm:%s3]
    %5 = vst [vmem:[#allocation1] sm:%s3] %v4
    %v6 = vld [vmem:[#allocation1] sm:$0x1]
    %vm7 = vcmask 261120
    %8 = vst.msk [vmem:[#allocation0] sm:$0x1] %vm7, %v6
    %s9 = scalar_lea.vmem [#allocation1], 3
    %v10 = vld [vmem:[%s9] sm:$0x1]
    %11 = vrot.lane.b32.xlu0 %v10, 96
    %v12 = vpop.permute.xlu0 %11
    %vm13 = vcmask 1048320
    %14 = vst.msk [vmem:[#allocation0] sm:$0x1] %vm13, %v12
    %s15 = scalar_lea.vmem [#allocation1], 2
    %v16 = vld [vmem:[%s15] sm:$0x1]
    %17 = vrot.lane.b32.xlu0 %v16, 64
    %v18 = vpop.permute.xlu0 %17
    %vm19 = vcmask 785920
    %20 = vst.msk [vmem:[#allocation0] sm:$0x1] %vm19, %v18
    %s21 = scalar_lea.vmem [#allocation1], 1
    %v22 = vld [vmem:[%s21] sm:$0x1]
    %23 = vrot.lane.b32.xlu0 %v22, 32
    %v24 = vpop.permute.xlu0 %23
    %vm25 = vcmask 523520
    %26 = vst.msk [vmem:[#allocation0] sm:$0x1] %vm25, %v24
    %s28 = sshllo.u32 0, 1
    %v30 = vld [vmem:[#allocation0] sm:%s28]
    %s31 = sshllo.u32 0, 1
    %32 = vst [vmem:[%s1] sm:%s31] %v30

// kernel: g_transformer_forward.3
$region0: #{g_transformer_forward.3}
  #allocation0 [shape = 'u32[]', space=smem, size = 0x4, offset = 0x4, fixed_abs, tag = 'smem constant byte address 0x4 - core index']
  #allocation1 [shape = 'u32[144,128]{1,0:T(1,128)}', space=vmem, size = 0x12000, scoped, tag = 'internal scratch']
  %s0 = inlined_call_operand.vmem [shape: f32[32,128], index: 0, kind: input, shape index: {}]
  %s1 = inlined_call_operand.vmem [shape: f32[32,128], index: 1, kind: input, shape index: {}]
  %s2 = inlined_call_operand.vmem [shape: f32[1,128], index: 2, kind: input, shape index: {}]
  %s3 = inlined_call_operand.vmem [shape: f32[1,128], index: 3, kind: input, shape index: {}]
  %s4 = inlined_call_operand.vmem [shape: f32[32,128], index: 4, kind: output, shape index: {}]
  %s5 = sld [smem:[#allocation0]]
  $region26: #{g_transformer_forward.3} parent=0
    _
  %s7 = ssub.s32 1, %s5
  %s8 = scalar_select 0, %s7, %s5
  // Predicated region
  $region2: #{g_transformer_forward.3} parent=0 // pred_check
    _
  $region3: #{g_transformer_forward.3} parent=0 // pred_check_branch
    %10 = sbr.rel (0) target = $region5
  $region4: #{g_transformer_forward.3} parent=0 // pred_region
    _
  $region5: #{g_transformer_forward.3} parent=0 // pred_fallthru
    _
  // Predicated region
  $region6: #{g_transformer_forward.3} parent=0 // pred_check
    _
  $region7: #{g_transformer_forward.3} parent=0 // pred_check_branch
    %12 = sbr.rel (0) target = $region9
  $region8: #{g_transformer_forward.3} parent=0 // pred_region
    _
  $region9: #{g_transformer_forward.3} parent=0 // pred_fallthru
    _
  // Predicated region
  $region10: #{g_transformer_forward.3} parent=0 // pred_check
    _
  $region11: #{g_transformer_forward.3} parent=0 // pred_check_branch
    %14 = sbr.rel (0) target = $region13
  $region12: #{g_transformer_forward.3} parent=0 // pred_region
    _
  $region13: #{g_transformer_forward.3} parent=0 // pred_fallthru
    _
  // Predicated region
  $region14: #{g_transformer_forward.3} parent=0 // pred_check
    _
  $region15: #{g_transformer_forward.3} parent=0 // pred_check_branch
    %16 = sbr.rel (0) target = $region17
  $region16: #{g_transformer_forward.3} parent=0 // pred_region
    _
  $region17: #{g_transformer_forward.3} parent=0 // pred_fallthru
    _
  %v17 = vld [vmem:[%s0] sm:$0xff]
  %v18 = vld [vmem:[%s0 + $0x8] sm:$0xff]
  %v19 = vld [vmem:[%s0 + $0x10] sm:$0xff]
  %v20 = vld [vmem:[%s0 + $0x18] sm:$0xff]
  %v21 = vld [vmem:[%s2] sm:$0x1]
  %v23 = vlaneseq
  %v24 = vshrl.u32 %v23, 7
  %v25 = vsub.s32 0, %v24
  %v26 = vrot.slane %v21, %v25
  %v28 = vmul.f32 %v17, %v26
  %v29 = vmul.f32 %v18, %v26
  %v30 = vmul.f32 %v19, %v26
  %v31 = vmul.f32 %v20, %v26
  %v32 = vld [vmem:[%s3] sm:$0x1]
  %v34 = vlaneseq
  %v35 = vshrl.u32 %v34, 7
  %v36 = vsub.s32 0, %v35
  %v37 = vrot.slane %v32, %v36
  %v39 = vadd.f32 %v28, %v37
  %v40 = vadd.f32 %v29, %v37
  %v41 = vadd.f32 %v30, %v37
  %v42 = vadd.f32 %v31, %v37
  %v43 = vld [vmem:[%s1] sm:$0xff]
  %v44 = vld [vmem:[%s1 + $0x8] sm:$0xff]
  %v45 = vld [vmem:[%s1 + $0x10] sm:$0xff]
  %v46 = vld [vmem:[%s1 + $0x18] sm:$0xff]
  %v47 = vmax.f32 %v39, 0.0
  %v48 = vmax.f32 %v40, 0.0
  %v49 = vmax.f32 %v41, 0.0
  %v50 = vmax.f32 %v42, 0.0
  %v51 = vadd.f32 %v43, %v47
  %v52 = vadd.f32 %v44, %v48
  %v53 = vadd.f32 %v45, %v49
  %v54 = vadd.f32 %v46, %v50
  %55 = vst [vmem:[%s4] sm:$0xff] %v51
  %56 = vst [vmem:[%s4 + $0x8] sm:$0xff] %v52
  %57 = vst [vmem:[%s4 + $0x10] sm:$0xff] %v53
  %58 = vst [vmem:[%s4 + $0x18] sm:$0xff] %v54
  // Predicated region
  $region18: #{g_transformer_forward.3} parent=0 // pred_check
    _
  $region19: #{g_transformer_forward.3} parent=0 // pred_check_branch
    %60 = sbr.rel (0) target = $region21
  $region20: #{g_transformer_forward.3} parent=0 // pred_region
    _
  $region21: #{g_transformer_forward.3} parent=0 // pred_fallthru
    _
  // Predicated region
  $region22: #{g_transformer_forward.3} parent=0 // pred_check
    _
  $region23: #{g_transformer_forward.3} parent=0 // pred_check_branch
    %62 = sbr.rel (0) target = $region25
  $region24: #{g_transformer_forward.3} parent=0 // pred_region
    _
  $region25: #{g_transformer_forward.3} parent=0 // pred_fallthru
    _

// kernel: g_transformer_forward.2
$region0: #{g_transformer_forward.2}
  #allocation0 [shape = 'u32[]', space=smem, size = 0x4, offset = 0x4, fixed_abs, tag = 'smem constant byte address 0x4 - core index']
  #allocation1 [shape = 'u32[144,128]{1,0:T(1,128)}', space=vmem, size = 0x12000, scoped, tag = 'internal scratch']
  %s0 = inlined_call_operand.vmem [shape: f32[8,16,32], index: 0, kind: input, shape index: {}]
  %s1 = inlined_call_operand.vmem [shape: f32[32,65], index: 1, kind: input, shape index: {}]
  %s2 = inlined_call_operand.vmem [shape: f32[1,65], index: 2, kind: input, shape index: {}]
  %s3 = inlined_call_operand.vmem [shape: f32[32,32], index: 3, kind: input, shape index: {}]
  %s4 = inlined_call_operand.vmem [shape: f32[1,32], index: 4, kind: input, shape index: {}]
  %s5 = inlined_call_operand.vmem [shape: f32[8,16,32], index: 5, kind: output, shape index: {0}]
  %s6 = inlined_call_operand.vmem [shape: f32[2,2,32], index: 6, kind: output, shape index: {1}]
  %7 = xla_tuple %s5, %s6
  %s8 = sld [smem:[#allocation0]]
  $region61: #{g_transformer_forward.2} parent=0
    _
  %s10 = ssub.s32 1, %s8
  %s11 = scalar_select 0, %s10, %s8
  loop: start=0, step=1, limit=4
  $region2: #{g_transformer_forward.2} parent=0 // loop_pre_header
    _
  $region3: #{g_transformer_forward.2} parent=0 // loop_header
    %s13 = sphi 0, %s17
    %p14 = scmp.ge.s32.totalorder %s13, 4
    %s23 = sphi 0, %s25
    %s26 = sphi 0, %s23
    %s27 = sphi 0, %s26
    %s43 = sphi 0, %s27
    %s47 = sphi 0, %s47
    %s49 = sphi 0, %s47
    %s50 = sphi 0, %s49
    %s64 = sphi 0, %s50
    %s68 = sphi 0, %s68
    %s70 = sphi 0, %s68
    %s71 = sphi 0, %s70
    %s85 = sphi 0, %s71
    %s89 = sphi 0, %s89
    %s91 = sphi 0, %s89
    %s92 = sphi 0, %s91
    %s106 = sphi 0, %s92
    %s110 = sphi 0, %s110
    %s112 = sphi 0, %s110
    %s113 = sphi 0, %s112
    %s127 = sphi 0, %s113
    %s133 = sphi 0, %s135
    %s136 = sphi 0, %s133
    %s137 = sphi 0, %s136
    %s153 = sphi 0, %s137
    %s159 = sphi 0, %s161
    %s162 = sphi 0, %s159
    %s163 = sphi 0, %s162
    %s179 = sphi 0, %s163
  $region4: #{g_transformer_forward.2} parent=0 // loop_header_branch
    %16 = sbr.rel (%p14) target = $region8
  $region5: #{g_transformer_forward.2} parent=0 // loop_body
    %s18 = ssub.s32 %s13, 1
    %s19 = ssub.s32 %s13, 2
    %s20 = sadd.s32 %s13, 1
    %s21 = ssub.s32 %s13, %s20
    %p22 = scmp.eq.s32.totalorder %s21, 0
    %s24 = sadd.s32 %s23, 1
    %s25 = scalar_select %p22, %s23, %s24
    %p28 = pneg %p22
    %p29 = scmp.eq.s32.totalorder %s13, 1
    %p30 = por %p28, %p29
    %p31 = scmp.ne.s32.totalorder %s23, %s26
    %p32 = scmp.eq.s32.totalorder %s13, 0
    %p33 = por %p31, %p32
    %p34 = scmp.ne.s32.totalorder %s23, %s26
    %p35 = scmp.eq.s32.totalorder %s18, 1
    %p36 = por %p34, %p35
    %p37 = scmp.ne.s32.totalorder %s26, %s27
    %p38 = scmp.eq.s32.totalorder %s18, 0
    %p39 = por %p37, %p38
    %p40 = scmp.ne.s32.totalorder %s26, %s27
    %p41 = scmp.eq.s32.totalorder %s19, 1
    %p42 = por %p40, %p41
    %p44 = scmp.ne.s32.totalorder %s27, %s43
    %p45 = scmp.eq.s32.totalorder %s19, 0
    %p46 = por %p44, %p45
    %s48 = sadd.s32 %s47, 1
    %p51 = scmp.eq.s32.totalorder %s13, 1
    %p52 = scmp.ne.s32.totalorder %s47, %s49
    %p53 = scmp.eq.s32.totalorder %s13, 0
    %p54 = por %p52, %p53
    %p55 = scmp.ne.s32.totalorder %s47, %s49
    %p56 = scmp.eq.s32.totalorder %s18, 1
    %p57 = por %p55, %p56
    %p58 = scmp.ne.s32.totalorder %s49, %s50
    %p59 = scmp.eq.s32.totalorder %s18, 0
    %p60 = por %p58, %p59
    %p61 = scmp.ne.s32.totalorder %s49, %s50
    %p62 = scmp.eq.s32.totalorder %s19, 1
    %p63 = por %p61, %p62
    %p65 = scmp.ne.s32.totalorder %s50, %s64
    %p66 = scmp.eq.s32.totalorder %s19, 0
    %p67 = por %p65, %p66
    %s69 = sadd.s32 %s68, 1
    %p72 = scmp.eq.s32.totalorder %s13, 1
    %p73 = scmp.ne.s32.totalorder %s68, %s70
    %p74 = scmp.eq.s32.totalorder %s13, 0
    %p75 = por %p73, %p74
    %p76 = scmp.ne.s32.totalorder %s68, %s70
    %p77 = scmp.eq.s32.totalorder %s18, 1
    %p78 = por %p76, %p77
    %p79 = scmp.ne.s32.totalorder %s70, %s71
    %p80 = scmp.eq.s32.totalorder %s18, 0
    %p81 = por %p79, %p80
    %p82 = scmp.ne.s32.totalorder %s70, %s71
    %p83 = scmp.eq.s32.totalorder %s19, 1
    %p84 = por %p82, %p83
    %p86 = scmp.ne.s32.totalorder %s71, %s85
    %p87 = scmp.eq.s32.totalorder %s19, 0
    %p88 = por %p86, %p87
    %s90 = sadd.s32 %s89, 1
    %p93 = scmp.eq.s32.totalorder %s13, 1
    %p94 = scmp.ne.s32.totalorder %s89, %s91
    %p95 = scmp.eq.s32.totalorder %s13, 0
    %p96 = por %p94, %p95
    %p97 = scmp.ne.s32.totalorder %s89, %s91
    %p98 = scmp.eq.s32.totalorder %s18, 1
    %p99 = por %p97, %p98
    %p100 = scmp.ne.s32.totalorder %s91, %s92
    %p101 = scmp.eq.s32.totalorder %s18, 0
    %p102 = por %p100, %p101
    %p103 = scmp.ne.s32.totalorder %s91, %s92
    %p104 = scmp.eq.s32.totalorder %s19, 1
    %p105 = por %p103, %p104
    %p107 = scmp.ne.s32.totalorder %s92, %s106
    %p108 = scmp.eq.s32.totalorder %s19, 0
    %p109 = por %p107, %p108
    %s111 = sadd.s32 %s110, 1
    %p114 = scmp.eq.s32.totalorder %s13, 1
    %p115 = scmp.ne.s32.totalorder %s110, %s112
    %p116 = scmp.eq.s32.totalorder %s13, 0
    %p117 = por %p115, %p116
    %p118 = scmp.ne.s32.totalorder %s110, %s112
    %p119 = scmp.eq.s32.totalorder %s18, 1
    %p120 = por %p118, %p119
    %p121 = scmp.ne.s32.totalorder %s112, %s113
    %p122 = scmp.eq.s32.totalorder %s18, 0
    %p123 = por %p121, %p122
    %p124 = scmp.ne.s32.totalorder %s112, %s113
    %p125 = scmp.eq.s32.totalorder %s19, 1
    %p126 = por %p124, %p125
    %p128 = scmp.ne.s32.totalorder %s113, %s127
    %p129 = scmp.eq.s32.totalorder %s19, 0
    %p130 = por %p128, %p129
    %s131 = ssub.s32 %s13, %s20
    %p132 = scmp.eq.s32.totalorder %s131, 0
    %s134 = sadd.s32 %s133, 1
    %s135 = scalar_select %p132, %s133, %s134
    %p138 = pneg %p132
    %p139 = scmp.eq.s32.totalorder %s13, 1
    %p140 = por %p138, %p139
    %p141 = scmp.ne.s32.totalorder %s133, %s136
    %p142 = scmp.eq.s32.totalorder %s13, 0
    %p143 = por %p141, %p142
    %p144 = scmp.ne.s32.totalorder %s133, %s136
    %p145 = scmp.eq.s32.totalorder %s18, 1
    %p146 = por %p144, %p145
    %p147 = scmp.ne.s32.totalorder %s136, %s137
    %p148 = scmp.eq.s32.totalorder %s18, 0
    %p149 = por %p147, %p148
    %p150 = scmp.ne.s32.totalorder %s136, %s137
    %p151 = scmp.eq.s32.totalorder %s19, 1
    %p152 = por %p150, %p151
    %p154 = scmp.ne.s32.totalorder %s137, %s153
    %p155 = scmp.eq.s32.totalorder %s19, 0
    %p156 = por %p154, %p155
    %s157 = ssub.s32 %s13, %s20
    %p158 = scmp.eq.s32.totalorder %s157, 0
    %s160 = sadd.s32 %s159, 1
    %s161 = scalar_select %p158, %s159, %s160
    %p164 = pneg %p158
    %p165 = scmp.eq.s32.totalorder %s13, 1
    %p166 = por %p164, %p165
    %p167 = scmp.ne.s32.totalorder %s159, %s162
    %p168 = scmp.eq.s32.totalorder %s13, 0
    %p169 = por %p167, %p168
    %p170 = scmp.ne.s32.totalorder %s159, %s162
    %p171 = scmp.eq.s32.totalorder %s18, 1
    %p172 = por %p170, %p171
    %p173 = scmp.ne.s32.totalorder %s162, %s163
    %p174 = scmp.eq.s32.totalorder %s18, 0
    %p175 = por %p173, %p174
    %p176 = scmp.ne.s32.totalorder %s162, %s163
    %p177 = scmp.eq.s32.totalorder %s19, 1
    %p178 = por %p176, %p177
    %p180 = scmp.ne.s32.totalorder %s163, %s179
    %p181 = scmp.eq.s32.totalorder %s19, 0
    %p182 = por %p180, %p181
    %p183 = scmp.le.s32.totalorder 1, %s13
    %p184 = scmp.lt.s32.totalorder %s13, 3
    %p185 = pnand %p183, %p184
    %p186 = pneg %p185
    // Predicated region
    $region9: #{g_transformer_forward.2} parent=5 // pred_check
      _
    $region10: #{g_transformer_forward.2} parent=5 // pred_check_branch
      %188 = sbr.rel (%p185) target = $region12
    $region11: #{g_transformer_forward.2} parent=5 // pred_region
      %s189 = ssub.s32 %s13, 1
      // Predicated region
      $region13: #{g_transformer_forward.2} parent=11 // pred_check
        %p190 = pneg %p60
      $region14: #{g_transformer_forward.2} parent=11 // pred_check_branch
        %192 = sbr.rel (%p190) target = $region16
      $region15: #{g_transformer_forward.2} parent=11 // pred_region
        _
      $region16: #{g_transformer_forward.2} parent=11 // pred_fallthru
        _
      // Predicated region
      $region17: #{g_transformer_forward.2} parent=11 // pred_check
        %p193 = pneg %p81
      $region18: #{g_transformer_forward.2} parent=11 // pred_check_branch
        %195 = sbr.rel (%p193) target = $region20
      $region19: #{g_transformer_forward.2} parent=11 // pred_region
        _
      $region20: #{g_transformer_forward.2} parent=11 // pred_fallthru
        _
      // Predicated region
      $region21: #{g_transformer_forward.2} parent=11 // pred_check
        %p196 = pneg %p102
      $region22: #{g_transformer_forward.2} parent=11 // pred_check_branch
        %198 = sbr.rel (%p196) target = $region24
      $region23: #{g_transformer_forward.2} parent=11 // pred_region
        _
      $region24: #{g_transformer_forward.2} parent=11 // pred_fallthru
        _
      // Predicated region
      $region25: #{g_transformer_forward.2} parent=11 // pred_check
        %p199 = pneg %p123
      $region26: #{g_transformer_forward.2} parent=11 // pred_check_branch
        %201 = sbr.rel (%p199) target = $region28
      $region27: #{g_transformer_forward.2} parent=11 // pred_region
        _
      $region28: #{g_transformer_forward.2} parent=11 // pred_fallthru
        _
    $region12: #{g_transformer_forward.2} parent=5 // pred_fallthru
      _
    %p202 = scmp.lt.s32.totalorder %s13, 2
    // Predicated region
    $region29: #{g_transformer_forward.2} parent=5 // pred_check
      %p203 = pneg %p202
    $region30: #{g_transformer_forward.2} parent=5 // pred_check_branch
      %205 = sbr.rel (%p203) target = $region32
    $region31: #{g_transformer_forward.2} parent=5 // pred_region
      // Predicated region
      $region33: #{g_transformer_forward.2} parent=31 // pred_check
        %p206 = pneg %p33
      $region34: #{g_transformer_forward.2} parent=31 // pred_check_branch
        %208 = sbr.rel (%p206) target = $region36
      $region35: #{g_transformer_forward.2} parent=31 // pred_region
        %s209 = smul.u32 4, %s13
        %p210 = scmp.lt.s32.totalorder %s209, 7
        %s211 = scalar_select %p210, %s209, 7
        %s212 = smul.addr %s211, 2
        %s213 = smul.addr %s212, 8
        %s214 = scalar_lea.vmem %s0, %s213
        %s215 = smul.u32 4, %s13
      $region36: #{g_transformer_forward.2} parent=31 // pred_fallthru
        _
    $region32: #{g_transformer_forward.2} parent=5 // pred_fallthru
      _
    %p216 = scmp.le.s32.totalorder 1, %s13
    %p217 = scmp.lt.s32.totalorder %s13, 3
    %p218 = pnand %p216, %p217
    %p219 = pneg %p218
    // Predicated region
    $region37: #{g_transformer_forward.2} parent=5 // pred_check
      _
    $region38: #{g_transformer_forward.2} parent=5 // pred_check_branch
      %221 = sbr.rel (%p218) target = $region40
    $region39: #{g_transformer_forward.2} parent=5 // pred_region
      %s222 = ssub.s32 %s13, 1
      %s223 = smul.u32 4, %s18
      %p224 = scmp.lt.s32.totalorder %s223, 7
      %s225 = scalar_select %p224, %s223, 7
      %s226 = smul.addr %s225, 2
      %s227 = smul.addr %s226, 8
      %s228 = scalar_lea.vmem %s0, %s227
      %p229 = pneg %p39
      %p230 = pneg %p36
      %p231 = pneg %p60
      %p232 = pneg %p57
      %p233 = pneg %p81
      %p234 = pneg %p78
      %p235 = pneg %p102
      %p236 = pneg %p99
      %p237 = pneg %p123
      %p238 = pneg %p120
      %p239 = pneg %p149
      %p240 = pneg %p146
      %s241 = smul.u32 4, %s18
      %p242 = scmp.lt.s32.totalorder %s241, 7
      %s243 = scalar_select %p242, %s241, 7
      %s244 = smul.addr %s243, 2
      %s245 = smul.addr %s244, 8
      %s246 = scalar_lea.vmem %s5, %s245
      %p247 = pneg %p175
      %p248 = pneg %p172
      %p249 = scmp.lt.s32.totalorder %s18, 1
      %s250 = scalar_select %p249, %s18, 1
      %s251 = smul.addr %s250, 2
      %s252 = scalar_lea.vmem %s6, %s251
      %s253 = smul.u32 4, %s18
      %p254 = scmp.lt.s32.totalorder %s253, 7
      %s255 = scalar_select %p254, %s253, 7
      %s256 = smul.addr %s255, 2
      %s257 = smul.addr %s256, 8
      %s258 = scalar_lea.vmem %s0, %s257
      %s259 = smul.u32 4, %s18
      %s260 = smul.u32 4, %s18
      %p261 = scmp.lt.s32.totalorder %s260, 7
      %s262 = scalar_select %p261, %s260, 7
      %s263 = smul.addr %s262, 2
      %s264 = smul.addr %s263, 8
      %s265 = scalar_lea.vmem %s5, %s264
      %s266 = smul.u32 4, %s18
      %p267 = scmp.lt.s32.totalorder %s18, 1
      %s268 = scalar_select %p267, %s18, 1
      %s269 = smul.addr %s268, 2
      %s270 = scalar_lea.vmem %s6, %s269
      %v271 = vld [vmem:[%s258] sm:$0xff]
      %v272 = vld [vmem:[%s258 + $0x8] sm:$0xff]
      %v273 = vld [vmem:[%s258 + $0x10] sm:$0xff]
      %v274 = vld [vmem:[%s258 + $0x18] sm:$0xff]
      %v275 = vld [vmem:[%s258 + $0x20] sm:$0xff]
      %v276 = vld [vmem:[%s258 + $0x28] sm:$0xff]
      %v277 = vld [vmem:[%s258 + $0x30] sm:$0xff]
      %v278 = vld [vmem:[%s258 + $0x38] sm:$0xff]
      %v279 = vld [vmem:[%s1] sm:$0xff]
      %v280 = vld [vmem:[%s1 + $0x8] sm:$0xff]
      %v281 = vld [vmem:[%s1 + $0x10] sm:$0xff]
      %v282 = vld [vmem:[%s1 + $0x18] sm:$0xff]
      %v283 = vld [vmem:[%s2] sm:$0x1]
      %v285 = vlaneseq
      %v286 = vshrl.u32 %v285, 7
      %v287 = vsub.s32 0, %v286
      %v288 = vrot.slane %v283, %v287
      %vm290 = vcmask 261120
      %v292 = vsel %vm290, %v271, 0
      %v295 = vsel %vm290, %v272, 0
      %v298 = vsel %vm290, %v273, 0
      %v301 = vsel %vm290, %v274, 0
      %v304 = vsel %vm290, %v275, 0
      %v307 = vsel %vm290, %v276, 0
      %v310 = vsel %vm290, %v277, 0
      %v313 = vsel %vm290, %v278, 0
      %315 = vmatprep.subr.mxu0 0.0
      %316 = vmatpush1.msra.mxu0 %v279
      %317 = vmatprep.subr.mxu0 0.0
      %318 = vmatpush1.msra.mxu0 %v280
      %319 = vmatprep.subr.mxu0 0.0
      %320 = vmatpush1.msra.mxu0 %v281
      %321 = vmatprep.subr.mxu0 0.0
      %322 = vmatpush1.msra.mxu0 %v282
      %323 = vmatprep.subr.mxu0 0.0
      %324 = vmatpush1.msra.mxu0 0.0
      %325 = vmatprep.subr.mxu0 0.0
      %326 = vmatpush1.msra.mxu0 0.0
      %327 = vmatprep.subr.mxu0 0.0
      %328 = vmatpush1.msra.mxu0 0.0
      %329 = vmatprep.subr.mxu0 0.0
      %330 = vmatpush1.msra.mxu0 0.0
      %331 = vmatprep.subr.mxu0 0.0
      %332 = vmatpush1.msra.mxu0 0.0
      %333 = vmatprep.subr.mxu0 0.0
      %334 = vmatpush1.msra.mxu0 0.0
      %335 = vmatprep.subr.mxu0 0.0
      %336 = vmatpush1.msra.mxu0 0.0
      %337 = vmatprep.subr.mxu0 0.0
      %338 = vmatpush1.msra.mxu0 0.0
      %339 = vmatprep.subr.mxu0 0.0
      %340 = vmatpush1.msra.mxu0 0.0
      %341 = vmatprep.subr.mxu0 0.0
      %342 = vmatpush1.msra.mxu0 0.0
      %343 = vmatprep.subr.mxu0 0.0
      %344 = vmatpush1.msra.mxu0 0.0
      %345 = vmatprep.subr.mxu0 0.0
      %346 = vmatpush1.msra.mxu0 0.0
      %347 = vmatprep.subr.mxu0 0.0
      %348 = vmatpush1.msra.mxu0 0.0
      %349 = vmatprep.subr.mxu0 0.0
      %350 = vmatpush1.msra.mxu0 0.0
      %351 = vmatprep.subr.mxu0 0.0
      %352 = vmatpush1.msra.mxu0 0.0
      %353 = vmatprep.subr.mxu0 0.0
      %354 = vmatpush1.msra.mxu0 0.0
      %355 = vmatprep.subr.mxu0 0.0
      %356 = vmatpush1.msra.mxu0 0.0
      %357 = vmatprep.subr.mxu0 0.0
      %358 = vmatpush1.msra.mxu0 0.0
      %359 = vmatprep.subr.mxu0 0.0
      %360 = vmatpush1.msra.mxu0 0.0
      %361 = vmatprep.subr.mxu0 0.0
      %362 = vmatpush1.msra.mxu0 0.0
      %363 = vmatprep.subr.mxu0 0.0
      %364 = vmatpush1.msra.mxu0 0.0
      %365 = vmatprep.subr.mxu0 0.0
      %366 = vmatpush1.msra.mxu0 0.0
      %367 = vmatprep.subr.mxu0 0.0
      %368 = vmatpush1.msra.mxu0 0.0
      %369 = vmatprep.subr.mxu0 0.0
      %370 = vmatpush1.msra.mxu0 0.0
      %371 = vmatprep.subr.mxu0 0.0
      %372 = vmatpush1.msra.mxu0 0.0
      %373 = vmatprep.subr.mxu0 0.0
      %374 = vmatpush1.msra.mxu0 0.0
      %375 = vmatprep.subr.mxu0 0.0
      %376 = vmatpush1.msra.mxu0 0.0
      %377 = vmatprep.subr.mxu0 0.0
      %378 = vmatpush1.msra.mxu0 0.0
      %379 = vmatprep.mubr.f32.mxu0 0.0
      %380 = vmatmul.mubr.f32.gmra.mrb[0].mxu0 %v292
      %v381 = vpop.f32.mrb[0].mxu0
      %v382 = vadd.f32 %v288, %v381
      %v383 = vpop.f32.mrb[0].mxu0
      %384 = vmatprep.mubr.f32.mxu0 0.0
      %385 = vmatmul.mubr.f32.gmra.mrb[0].mxu0 %v295
      %v386 = vpop.f32.mrb[0].mxu0
      %v387 = vadd.f32 %v288, %v386
      %v388 = vpop.f32.mrb[0].mxu0
      %389 = vmatprep.mubr.f32.mxu0 0.0
      %390 = vmatmul.mubr.f32.gmra.mrb[0].mxu0 %v298
      %v391 = vpop.f32.mrb[0].mxu0
      %v392 = vadd.f32 %v288, %v391
      %v393 = vpop.f32.mrb[0].mxu0
      %394 = vmatprep.mubr.f32.mxu0 0.0
      %395 = vmatmul.mubr.f32.gmra.mrb[0].mxu0 %v301
      %v396 = vpop.f32.mrb[0].mxu0
      %v397 = vadd.f32 %v288, %v396
      %v398 = vpop.f32.mrb[0].mxu0
      %399 = vmatprep.mubr.f32.mxu0 0.0
      %400 = vmatmul.mubr.f32.gmra.mrb[0].mxu0 %v304
      %v401 = vpop.f32.mrb[0].mxu0
      %v402 = vadd.f32 %v288, %v401
      %v403 = vpop.f32.mrb[0].mxu0
      %404 = vmatprep.mubr.f32.mxu0 0.0
      %405 = vmatmul.mubr.f32.gmra.mrb[0].mxu0 %v307
      %v406 = vpop.f32.mrb[0].mxu0
      %v407 = vadd.f32 %v288, %v406
      %v408 = vpop.f32.mrb[0].mxu0
      %409 = vmatprep.mubr.f32.mxu0 0.0
      %410 = vmatmul.mubr.f32.gmra.mrb[0].mxu0 %v310
      %v411 = vpop.f32.mrb[0].mxu0
      %v412 = vadd.f32 %v288, %v411
      %v413 = vpop.f32.mrb[0].mxu0
      %414 = vmatprep.mubr.f32.mxu0 0.0
      %415 = vmatmul.mubr.f32.gmra.mrb[0].mxu0 %v313
      %v416 = vpop.f32.mrb[0].mxu0
      %v417 = vadd.f32 %v288, %v416
      %v418 = vpop.f32.mrb[0].mxu0
      %419 = vdwg.mxu0
      %v421 = vsel %vm290, %v382, 0
      %v424 = vsel %vm290, %v387, 0
      %426 = vmatprep.subr.mxu0 0.0
      %427 = vmatpush1.xpose.msra.mxu0 %v421
      %428 = vmatprep.subr.mxu0 0.0
      %429 = vmatpush1.xpose.msra.mxu0 %v424
      %430 = vmatprep.subr.mxu0 0.0
      %431 = vmatpush1.xpose.msra.mxu0 0.0
      %432 = vmatprep.subr.mxu0 0.0
      %433 = vmatpush1.xpose.msra.mxu0 0.0
      %434 = vmatprep.subr.mxu0 0.0
      %435 = vmatpush1.xpose.msra.mxu0 0.0
      %436 = vmatprep.subr.mxu0 0.0
      %437 = vmatpush1.xpose.msra.mxu0 0.0
      %438 = vmatprep.subr.mxu0 0.0
      %439 = vmatpush1.xpose.msra.mxu0 0.0
      %440 = vmatprep.subr.mxu0 0.0
      %441 = vmatpush1.xpose.msra.mxu0 0.0
      %442 = vmatprep.subr.mxu0 0.0
      %443 = vmatpush1.xpose.msra.mxu0 0.0
      %444 = vmatprep.subr.mxu0 0.0
      %445 = vmatpush1.xpose.msra.mxu0 0.0
      %446 = vmatprep.subr.mxu0 0.0
      %447 = vmatpush1.xpose.msra.mxu0 0.0
      %448 = vmatprep.subr.mxu0 0.0
      %449 = vmatpush1.xpose.msra.mxu0 0.0
      %450 = vmatprep.subr.mxu0 0.0
      %451 = vmatpush1.xpose.msra.mxu0 0.0
      %452 = vmatprep.subr.mxu0 0.0
      %453 = vmatpush1.xpose.msra.mxu0 0.0
      %454 = vmatprep.subr.mxu0 0.0
      %455 = vmatpush1.xpose.msra.mxu0 0.0
      %456 = vmatprep.subr.mxu0 0.0
      %457 = vmatpush1.xpose.msra.mxu0 0.0
      %458 = vmatprep.subr.mxu0 0.0
      %459 = vmatpush1.xpose.msra.mxu0 0.0
      %460 = vmatprep.subr.mxu0 0.0
      %461 = vmatpush1.xpose.msra.mxu0 0.0
      %462 = vmatprep.subr.mxu0 0.0
      %463 = vmatpush1.xpose.msra.mxu0 0.0
      %464 = vmatprep.subr.mxu0 0.0
      %465 = vmatpush1.xpose.msra.mxu0 0.0
      %466 = vmatprep.subr.mxu0 0.0
      %467 = vmatpush1.xpose.msra.mxu0 0.0
      %468 = vmatprep.subr.mxu0 0.0
      %469 = vmatpush1.xpose.msra.mxu0 0.0
      %470 = vmatprep.subr.mxu0 0.0
      %471 = vmatpush1.xpose.msra.mxu0 0.0
      %472 = vmatprep.subr.mxu0 0.0
      %473 = vmatpush1.xpose.msra.mxu0 0.0
      %474 = vmatprep.subr.mxu0 0.0
      %475 = vmatpush1.xpose.msra.mxu0 0.0
      %476 = vmatprep.subr.mxu0 0.0
      %477 = vmatpush1.xpose.msra.mxu0 0.0
      %478 = vmatprep.subr.mxu0 0.0
      %479 = vmatpush1.xpose.msra.mxu0 0.0
      %480 = vmatprep.subr.mxu0 0.0
      %481 = vmatpush1.xpose.msra.mxu0 0.0
      %482 = vmatprep.subr.mxu0 0.0
      %483 = vmatpush1.xpose.msra.mxu0 0.0
      %484 = vmatprep.subr.mxu0 0.0
      %485 = vmatpush1.xpose.msra.mxu0 0.0
      %486 = vmatprep.subr.mxu0 0.0
      %487 = vmatpush1.xpose.msra.mxu0 0.0
      %488 = vmatprep.subr.mxu0 0.0
      %489 = vmatpush1.xpose.msra.mxu0 0.0
      %490 = vmatprep.mubr.f32.mxu0 0.0
      %491 = vmatmul.mubr.f32.gmra.mrb[0].mxu0 %v421
      %v492 = vpop.f32.mrb[0].mxu0
      %v493 = vadd.f32 0.0, %v492
      %v494 = vpop.f32.mrb[0].mxu0
      %495 = vmatprep.mubr.f32.mxu0 0.0
      %496 = vmatmul.mubr.f32.gmra.mrb[0].mxu0 %v424
      %v497 = vpop.f32.mrb[0].mxu0
      %v498 = vadd.f32 0.0, %v497
      %v499 = vpop.f32.mrb[0].mxu0
      %500 = vdwg.mxu0
      %v502 = vsel %vm290, %v392, 0
      %v505 = vsel %vm290, %v397, 0
      %507 = vmatprep.subr.mxu0 0.0
      %508 = vmatpush1.xpose.msra.mxu0 %v502
      %509 = vmatprep.subr.mxu0 0.0
      %510 = vmatpush1.xpose.msra.mxu0 %v505
      %511 = vmatprep.subr.mxu0 0.0
      %512 = vmatpush1.xpose.msra.mxu0 0.0
      %513 = vmatprep.subr.mxu0 0.0
      %514 = vmatpush1.xpose.msra.mxu0 0.0
      %515 = vmatprep.subr.mxu0 0.0
      %516 = vmatpush1.xpose.msra.mxu0 0.0
      %517 = vmatprep.subr.mxu0 0.0
      %518 = vmatpush1.xpose.msra.mxu0 0.0
      %519 = vmatprep.subr.mxu0 0.0
      %520 = vmatpush1.xpose.msra.mxu0 0.0
      %521 = vmatprep.subr.mxu0 0.0
      %522 = vmatpush1.xpose.msra.mxu0 0.0
      %523 = vmatprep.subr.mxu0 0.0
      %524 = vmatpush1.xpose.msra.mxu0 0.0
      %525 = vmatprep.subr.mxu0 0.0
      %526 = vmatpush1.xpose.msra.mxu0 0.0
      %527 = vmatprep.subr.mxu0 0.0
      %528 = vmatpush1.xpose.msra.mxu0 0.0
      %529 = vmatprep.subr.mxu0 0.0
      %530 = vmatpush1.xpose.msra.mxu0 0.0
      %531 = vmatprep.subr.mxu0 0.0
      %532 = vmatpush1.xpose.msra.mxu0 0.0
      %533 = vmatprep.subr.mxu0 0.0
      %534 = vmatpush1.xpose.msra.mxu0 0.0
      %535 = vmatprep.subr.mxu0 0.0
      %536 = vmatpush1.xpose.msra.mxu0 0.0
      %537 = vmatprep.subr.mxu0 0.0
      %538 = vmatpush1.xpose.msra.mxu0 0.0
      %539 = vmatprep.subr.mxu0 0.0
      %540 = vmatpush1.xpose.msra.mxu0 0.0
      %541 = vmatprep.subr.mxu0 0.0
      %542 = vmatpush1.xpose.msra.mxu0 0.0
      %543 = vmatprep.subr.mxu0 0.0
      %544 = vmatpush1.xpose.msra.mxu0 0.0
      %545 = vmatprep.subr.mxu0 0.0
      %546 = vmatpush1.xpose.msra.mxu0 0.0
      %547 = vmatprep.subr.mxu0 0.0
      %548 = vmatpush1.xpose.msra.mxu0 0.0
      %549 = vmatprep.subr.mxu0 0.0
      %550 = vmatpush1.xpose.msra.mxu0 0.0
      %551 = vmatprep.subr.mxu0 0.0
      %552 = vmatpush1.xpose.msra.mxu0 0.0
      %553 = vmatprep.subr.mxu0 0.0
      %554 = vmatpush1.xpose.msra.mxu0 0.0
      %555 = vmatprep.subr.mxu0 0.0
      %556 = vmatpush1.xpose.msra.mxu0 0.0
      %557 = vmatprep.subr.mxu0 0.0
      %558 = vmatpush1.xpose.msra.mxu0 0.0
      %559 = vmatprep.subr.mxu0 0.0
      %560 = vmatpush1.xpose.msra.mxu0 0.0
      %561 = vmatprep.subr.mxu0 0.0
      %562 = vmatpush1.xpose.msra.mxu0 0.0
      %563 = vmatprep.subr.mxu0 0.0
      %564 = vmatpush1.xpose.msra.mxu0 0.0
      %565 = vmatprep.subr.mxu0 0.0
      %566 = vmatpush1.xpose.msra.mxu0 0.0
      %567 = vmatprep.subr.mxu0 0.0
      %568 = vmatpush1.xpose.msra.mxu0 0.0
      %569 = vmatprep.subr.mxu0 0.0
      %570 = vmatpush1.xpose.msra.mxu0 0.0
      %571 = vmatprep.mubr.f32.mxu0 0.0
      %572 = vmatmul.mubr.f32.gmra.mrb[0].mxu0 %v502
      %v573 = vpop.f32.mrb[0].mxu0
      %v574 = vadd.f32 0.0, %v573
      %v575 = vpop.f32.mrb[0].mxu0
      %576 = vmatprep.mubr.f32.mxu0 0.0
      %577 = vmatmul.mubr.f32.gmra.mrb[0].mxu0 %v505
      %v578 = vpop.f32.mrb[0].mxu0
      %v579 = vadd.f32 0.0, %v578
      %v580 = vpop.f32.mrb[0].mxu0
      %581 = vdwg.mxu0
      %v583 = vsel %vm290, %v402, 0
      %v586 = vsel %vm290, %v407, 0
      %588 = vmatprep.subr.mxu0 0.0
      %589 = vmatpush1.xpose.msra.mxu0 %v583
      %590 = vmatprep.subr.mxu0 0.0
      %591 = vmatpush1.xpose.msra.mxu0 %v586
      %592 = vmatprep.subr.mxu0 0.0
      %593 = vmatpush1.xpose.msra.mxu0 0.0
      %594 = vmatprep.subr.mxu0 0.0
      %595 = vmatpush1.xpose.msra.mxu0 0.0
      %596 = vmatprep.subr.mxu0 0.0
      %597 = vmatpush1.xpose.msra.mxu0 0.0
      %598 = vmatprep.subr.mxu0 0.0
      %599 = vmatpush1.xpose.msra.mxu0 0.0
      %600 = vmatprep.subr.mxu0 0.0
      %601 = vmatpush1.xpose.msra.mxu0 0.0
      %602 = vmatprep.subr.mxu0 0.0
      %603 = vmatpush1.xpose.msra.mxu0 0.0
      %604 = vmatprep.subr.mxu0 0.0
      %605 = vmatpush1.xpose.msra.mxu0 0.0
      %606 = vmatprep.subr.mxu0 0.0
      %607 = vmatpush1.xpose.msra.mxu0 0.0
      %608 = vmatprep.subr.mxu0 0.0
      %609 = vmatpush1.xpose.msra.mxu0 0.0
      %610 = vmatprep.subr.mxu0 0.0
      %611 = vmatpush1.xpose.msra.mxu0 0.0
      %612 = vmatprep.subr.mxu0 0.0
      %613 = vmatpush1.xpose.msra.mxu0 0.0
      %614 = vmatprep.subr.mxu0 0.0
      %615 = vmatpush1.xpose.msra.mxu0 0.0
      %616 = vmatprep.subr.mxu0 0.0
      %617 = vmatpush1.xpose.msra.mxu0 0.0
      %618 = vmatprep.subr.mxu0 0.0
      %619 = vmatpush1.xpose.msra.mxu0 0.0
      %620 = vmatprep.subr.mxu0 0.0
      %621 = vmatpush1.xpose.msra.mxu0 0.0
      %622 = vmatprep.subr.mxu0 0.0
      %623 = vmatpush1.xpose.msra.mxu0 0.0
      %624 = vmatprep.subr.mxu0 0.0
      %625 = vmatpush1.xpose.msra.mxu0 0.0
      %626 = vmatprep.subr.mxu0 0.0
      %627 = vmatpush1.xpose.msra.mxu0 0.0
      %628 = vmatprep.subr.mxu0 0.0
      %629 = vmatpush1.xpose.msra.mxu0 0.0
      %630 = vmatprep.subr.mxu0 0.0
      %631 = vmatpush1.xpose.msra.mxu0 0.0
      %632 = vmatprep.subr.mxu0 0.0
      %633 = vmatpush1.xpose.msra.mxu0 0.0
      %634 = vmatprep.subr.mxu0 0.0
      %635 = vmatpush1.xpose.msra.mxu0 0.0
      %636 = vmatprep.subr.mxu0 0.0
      %637 = vmatpush1.xpose.msra.mxu0 0.0
      %638 = vmatprep.subr.mxu0 0.0
      %639 = vmatpush1.xpose.msra.mxu0 0.0
      %640 = vmatprep.subr.mxu0 0.0
      %641 = vmatpush1.xpose.msra.mxu0 0.0
      %642 = vmatprep.subr.mxu0 0.0
      %643 = vmatpush1.xpose.msra.mxu0 0.0
      %644 = vmatprep.subr.mxu0 0.0
      %645 = vmatpush1.xpose.msra.mxu0 0.0
      %646 = vmatprep.subr.mxu0 0.0
      %647 = vmatpush1.xpose.msra.mxu0 0.0
      %648 = vmatprep.subr.mxu0 0.0
      %649 = vmatpush1.xpose.msra.mxu0 0.0
      %650 = vmatprep.subr.mxu0 0.0
      %651 = vmatpush1.xpose.msra.mxu0 0.0
      %652 = vmatprep.mubr.f32.mxu0 0.0
      %653 = vmatmul.mubr.f32.gmra.mrb[0].mxu0 %v583
      %v654 = vpop.f32.mrb[0].mxu0
      %v655 = vadd.f32 0.0, %v654
      %v656 = vpop.f32.mrb[0].mxu0
      %657 = vmatprep.mubr.f32.mxu0 0.0
      %658 = vmatmul.mubr.f32.gmra.mrb[0].mxu0 %v586
      %v659 = vpop.f32.mrb[0].mxu0
      %v660 = vadd.f32 0.0, %v659
      %v661 = vpop.f32.mrb[0].mxu0
      %662 = vdwg.mxu0
      %v664 = vsel %vm290, %v412, 0
      %v667 = vsel %vm290, %v417, 0
      %669 = vmatprep.subr.mxu0 0.0
      %670 = vmatpush1.xpose.msra.mxu0 %v664
      %671 = vmatprep.subr.mxu0 0.0
      %672 = vmatpush1.xpose.msra.mxu0 %v667
      %673 = vmatprep.subr.mxu0 0.0
      %674 = vmatpush1.xpose.msra.mxu0 0.0
      %675 = vmatprep.subr.mxu0 0.0
      %676 = vmatpush1.xpose.msra.mxu0 0.0
      %677 = vmatprep.subr.mxu0 0.0
      %678 = vmatpush1.xpose.msra.mxu0 0.0
      %679 = vmatprep.subr.mxu0 0.0
      %680 = vmatpush1.xpose.msra.mxu0 0.0
      %681 = vmatprep.subr.mxu0 0.0
      %682 = vmatpush1.xpose.msra.mxu0 0.0
      %683 = vmatprep.subr.mxu0 0.0
      %684 = vmatpush1.xpose.msra.mxu0 0.0
      %685 = vmatprep.subr.mxu0 0.0
      %686 = vmatpush1.xpose.msra.mxu0 0.0
      %687 = vmatprep.subr.mxu0 0.0
      %688 = vmatpush1.xpose.msra.mxu0 0.0
      %689 = vmatprep.subr.mxu0 0.0
      %690 = vmatpush1.xpose.msra.mxu0 0.0
      %691 = vmatprep.subr.mxu0 0.0
      %692 = vmatpush1.xpose.msra.mxu0 0.0
      %693 = vmatprep.subr.mxu0 0.0
      %694 = vmatpush1.xpose.msra.mxu0 0.0
      %695 = vmatprep.subr.mxu0 0.0
      %696 = vmatpush1.xpose.msra.mxu0 0.0
      %697 = vmatprep.subr.mxu0 0.0
      %698 = vmatpush1.xpose.msra.mxu0 0.0
      %699 = vmatprep.subr.mxu0 0.0
      %700 = vmatpush1.xpose.msra.mxu0 0.0
      %701 = vmatprep.subr.mxu0 0.0
      %702 = vmatpush1.xpose.msra.mxu0 0.0
      %703 = vmatprep.subr.mxu0 0.0
      %704 = vmatpush1.xpose.msra.mxu0 0.0
      %705 = vmatprep.subr.mxu0 0.0
      %706 = vmatpush1.xpose.msra.mxu0 0.0
      %707 = vmatprep.subr.mxu0 0.0
      %708 = vmatpush1.xpose.msra.mxu0 0.0
      %709 = vmatprep.subr.mxu0 0.0
      %710 = vmatpush1.xpose.msra.mxu0 0.0
      %711 = vmatprep.subr.mxu0 0.0
      %712 = vmatpush1.xpose.msra.mxu0 0.0
      %713 = vmatprep.subr.mxu0 0.0
      %714 = vmatpush1.xpose.msra.mxu0 0.0
      %715 = vmatprep.subr.mxu0 0.0
      %716 = vmatpush1.xpose.msra.mxu0 0.0
      %717 = vmatprep.subr.mxu0 0.0
      %718 = vmatpush1.xpose.msra.mxu0 0.0
      %719 = vmatprep.subr.mxu0 0.0
      %720 = vmatpush1.xpose.msra.mxu0 0.0
      %721 = vmatprep.subr.mxu0 0.0
      %722 = vmatpush1.xpose.msra.mxu0 0.0
      %723 = vmatprep.subr.mxu0 0.0
      %724 = vmatpush1.xpose.msra.mxu0 0.0
      %725 = vmatprep.subr.mxu0 0.0
      %726 = vmatpush1.xpose.msra.mxu0 0.0
      %727 = vmatprep.subr.mxu0 0.0
      %728 = vmatpush1.xpose.msra.mxu0 0.0
      %729 = vmatprep.subr.mxu0 0.0
      %730 = vmatpush1.xpose.msra.mxu0 0.0
      %731 = vmatprep.subr.mxu0 0.0
      %732 = vmatpush1.xpose.msra.mxu0 0.0
      %733 = vmatprep.mubr.f32.mxu0 0.0
      %734 = vmatmul.mubr.f32.gmra.mrb[0].mxu0 %v664
      %v735 = vpop.f32.mrb[0].mxu0
      %v736 = vadd.f32 0.0, %v735
      %v737 = vpop.f32.mrb[0].mxu0
      %738 = vmatprep.mubr.f32.mxu0 0.0
      %739 = vmatmul.mubr.f32.gmra.mrb[0].mxu0 %v667
      %v740 = vpop.f32.mrb[0].mxu0
      %v741 = vadd.f32 0.0, %v740
      %v742 = vpop.f32.mrb[0].mxu0
      %743 = vdwg.mxu0
      %vm744 = vcmask 130048
      %v745 = vsel %vm744, %v493, -inf
      %746 = vmax.xlane.f32.xlu0 %v745
      %v747 = vpop.xlane.xlu0 %746
      %v748 = vsel %vm744, %v498, -inf
      %749 = vmax.xlane.f32.xlu0 %v748
      %v750 = vpop.xlane.xlu0 %749
      %v751 = vsel %vm744, %v574, -inf
      %752 = vmax.xlane.f32.xlu0 %v751
      %v753 = vpop.xlane.xlu0 %752
      %v754 = vsel %vm744, %v579, -inf
      %755 = vmax.xlane.f32.xlu0 %v754
      %v756 = vpop.xlane.xlu0 %755
      %v757 = vsel %vm744, %v655, -inf
      %758 = vmax.xlane.f32.xlu0 %v757
      %v759 = vpop.xlane.xlu0 %758
      %v760 = vsel %vm744, %v660, -inf
      %761 = vmax.xlane.f32.xlu0 %v760
      %v762 = vpop.xlane.xlu0 %761
      %v763 = vsel %vm744, %v736, -inf
      %764 = vmax.xlane.f32.xlu0 %v763
      %v765 = vpop.xlane.xlu0 %764
      %v766 = vsel %vm744, %v741, -inf
      %767 = vmax.xlane.f32.xlu0 %v766
      %v768 = vpop.xlane.xlu0 %767
      %v769 = vsub.f32 %v493, %v747
      %v770 = vsub.f32 %v498, %v750
      %v771 = vsub.f32 %v574, %v753
      %v772 = vsub.f32 %v579, %v756
      %v773 = vsub.f32 %v655, %v759
      %v774 = vsub.f32 %v660, %v762
      %v775 = vsub.f32 %v736, %v765
      %v776 = vsub.f32 %v741, %v768
      %v777 = vmul.f32 %v769, 1.442695
      %v778 = vpow.pop %v777
      %v779 = vmul.f32 %v770, 1.442695
      %v780 = vpow.pop %v779
      %v781 = vmul.f32 %v771, 1.442695
      %v782 = vpow.pop %v781
      %v783 = vmul.f32 %v772, 1.442695
      %v784 = vpow.pop %v783
      %v785 = vmul.f32 %v773, 1.442695
      %v786 = vpow.pop %v785
      %v787 = vmul.f32 %v774, 1.442695
      %v788 = vpow.pop %v787
      %v789 = vmul.f32 %v775, 1.442695
      %v790 = vpow.pop %v789
      %v791 = vmul.f32 %v776, 1.442695
      %v792 = vpow.pop %v791
      %v793 = vsel %vm744, %v778, 0.0
      %794 = vadd.xlane.f32.xlu0 %v793
      %v795 = vpop.xlane.xlu0 %794
      %v796 = vsel %vm744, %v780, 0.0
      %797 = vadd.xlane.f32.xlu0 %v796
      %v798 = vpop.xlane.xlu0 %797
      %v799 = vsel %vm744, %v782, 0.0
      %800 = vadd.xlane.f32.xlu0 %v799
      %v801 = vpop.xlane.xlu0 %800
      %v802 = vsel %vm744, %v784, 0.0
      %803 = vadd.xlane.f32.xlu0 %v802
      %v804 = vpop.xlane.xlu0 %803
      %v805 = vsel %vm744, %v786, 0.0
      %806 = vadd.xlane.f32.xlu0 %v805
      %v807 = vpop.xlane.xlu0 %806
      %v808 = vsel %vm744, %v788, 0.0
      %809 = vadd.xlane.f32.xlu0 %v808
      %v810 = vpop.xlane.xlu0 %809
      %v811 = vsel %vm744, %v790, 0.0
      %812 = vadd.xlane.f32.xlu0 %v811
      %v813 = vpop.xlane.xlu0 %812
      %v814 = vsel %vm744, %v792, 0.0
      %815 = vadd.xlane.f32.xlu0 %v814
      %v816 = vpop.xlane.xlu0 %815
      %v817 = vrcp.pop %v795
      %v818 = vrcp.pop %v798
      %v819 = vrcp.pop %v801
      %v820 = vrcp.pop %v804
      %v821 = vrcp.pop %v807
      %v822 = vrcp.pop %v810
      %v823 = vrcp.pop %v813
      %v824 = vrcp.pop %v816
      %v825 = vmul.f32 %v778, %v817
      %v826 = vmul.f32 %v780, %v818
      %v827 = vmul.f32 %v782, %v819
      %v828 = vmul.f32 %v784, %v820
      %v829 = vmul.f32 %v786, %v821
      %v830 = vmul.f32 %v788, %v822
      %v831 = vmul.f32 %v790, %v823
      %v832 = vmul.f32 %v792, %v824
      %833 = vxpose.xlu0.b32.start [1/16] %v825, 128
      %834 = vxpose.xlu0.b32.cont [2/16] %v826, 128
      %835 = vxpose.xlu0.b32.cont [3/16] 0.0, 128
      %836 = vxpose.xlu0.b32.cont [4/16] 0.0, 128
      %837 = vxpose.xlu0.b32.cont [5/16] 0.0, 128
      %838 = vxpose.xlu0.b32.cont [6/16] 0.0, 128
      %839 = vxpose.xlu0.b32.cont [7/16] 0.0, 128
      %840 = vxpose.xlu0.b32.cont [8/16] 0.0, 128
      %841 = vxpose.xlu0.b32.cont [9/16] 0.0, 128
      %842 = vxpose.xlu0.b32.cont [10/16] 0.0, 128
      %843 = vxpose.xlu0.b32.cont [11/16] 0.0, 128
      %844 = vxpose.xlu0.b32.cont [12/16] 0.0, 128
      %845 = vxpose.xlu0.b32.cont [13/16] 0.0, 128
      %846 = vxpose.xlu0.b32.cont [14/16] 0.0, 128
      %847 = vxpose.xlu0.b32.cont [15/16] 0.0, 128
      %848 = vxpose.xlu0.b32.end [16/16] 0.0, 128
      %v849 = vpop.trf.xlu0
      %v850 = vpop.trf.xlu0
      %v851 = vpop.trf.xlu0
      %v852 = vpop.trf.xlu0
      %v853 = vpop.trf.xlu0
      %v854 = vpop.trf.xlu0
      %v855 = vpop.trf.xlu0
      %v856 = vpop.trf.xlu0
      %v857 = vpop.trf.xlu0
      %v858 = vpop.trf.xlu0
      %v859 = vpop.trf.xlu0
      %v860 = vpop.trf.xlu0
      %v861 = vpop.trf.xlu0
      %v862 = vpop.trf.xlu0
      %v863 = vpop.trf.xlu0
      %v864 = vpop.trf.xlu0
      %865 = vrot.lane.b32.xlu0 %v382, 96
      %v866 = vpop.permute.xlu0 %865
      %867 = vrot.lane.b32.xlu0 %v387, 96
      %v868 = vpop.permute.xlu0 %867
      %v872 = vsel %vm744, %v849, 0
      %v875 = vsel %vm744, %v850, 0
      %877 = vmatprep.subr.mxu0 0.0
      %878 = vmatpush1.msra.mxu0 %v866
      %879 = vmatprep.subr.mxu0 0.0
      %880 = vmatpush1.msra.mxu0 %v868
      %881 = vmatprep.subr.mxu0 0.0
      %882 = vmatpush1.msra.mxu0 0.0
      %883 = vmatprep.subr.mxu0 0.0
      %884 = vmatpush1.msra.mxu0 0.0
      %885 = vmatprep.subr.mxu0 0.0
      %886 = vmatpush1.msra.mxu0 0.0
      %887 = vmatprep.subr.mxu0 0.0
      %888 = vmatpush1.msra.mxu0 0.0
      %889 = vmatprep.subr.mxu0 0.0
      %890 = vmatpush1.msra.mxu0 0.0
      %891 = vmatprep.subr.mxu0 0.0
      %892 = vmatpush1.msra.mxu0 0.0
      %893 = vmatprep.subr.mxu0 0.0
      %894 = vmatpush1.msra.mxu0 0.0
      %895 = vmatprep.subr.mxu0 0.0
      %896 = vmatpush1.msra.mxu0 0.0
      %897 = vmatprep.subr.mxu0 0.0
      %898 = vmatpush1.msra.mxu0 0.0
      %899 = vmatprep.subr.mxu0 0.0
      %900 = vmatpush1.msra.mxu0 0.0
      %901 = vmatprep.subr.mxu0 0.0
      %902 = vmatpush1.msra.mxu0 0.0
      %903 = vmatprep.subr.mxu0 0.0
      %904 = vmatpush1.msra.mxu0 0.0
      %905 = vmatprep.subr.mxu0 0.0
      %906 = vmatpush1.msra.mxu0 0.0
      %907 = vmatprep.subr.mxu0 0.0
      %908 = vmatpush1.msra.mxu0 0.0
      %909 = vmatprep.subr.mxu0 0.0
      %910 = vmatpush1.msra.mxu0 0.0
      %911 = vmatprep.subr.mxu0 0.0
      %912 = vmatpush1.msra.mxu0 0.0
      %913 = vmatprep.subr.mxu0 0.0
      %914 = vmatpush1.msra.mxu0 0.0
      %915 = vmatprep.subr.mxu0 0.0
      %916 = vmatpush1.msra.mxu0 0.0
      %917 = vmatprep.subr.mxu0 0.0
      %918 = vmatpush1.msra.mxu0 0.0
      %919 = vmatprep.subr.mxu0 0.0
      %920 = vmatpush1.msra.mxu0 0.0
      %921 = vmatprep.subr.mxu0 0.0
      %922 = vmatpush1.msra.mxu0 0.0
      %923 = vmatprep.subr.mxu0 0.0
      %924 = vmatpush1.msra.mxu0 0.0
      %925 = vmatprep.subr.mxu0 0.0
      %926 = vmatpush1.msra.mxu0 0.0
      %927 = vmatprep.subr.mxu0 0.0
      %928 = vmatpush1.msra.mxu0 0.0
      %929 = vmatprep.subr.mxu0 0.0
      %930 = vmatpush1.msra.mxu0 0.0
      %931 = vmatprep.subr.mxu0 0.0
      %932 = vmatpush1.msra.mxu0 0.0
      %933 = vmatprep.subr.mxu0 0.0
      %934 = vmatpush1.msra.mxu0 0.0
      %935 = vmatprep.subr.mxu0 0.0
      %936 = vmatpush1.msra.mxu0 0.0
      %937 = vmatprep.subr.mxu0 0.0
      %938 = vmatpush1.msra.mxu0 0.0
      %939 = vmatprep.subr.mxu0 0.0
      %940 = vmatpush1.msra.mxu0 0.0
      %941 = vmatprep.mubr.f32.mxu0 0.0
      %942 = vmatmul.mubr.f32.gmra.mrb[0].mxu0 %v872
      %v943 = vpop.f32.mrb[0].mxu0
      %v944 = vadd.f32 0.0, %v943
      %v945 = vpop.f32.mrb[0].mxu0
      %946 = vmatprep.mubr.f32.mxu0 0.0
      %947 = vmatmul.mubr.f32.gmra.mrb[0].mxu0 %v875
      %v948 = vpop.f32.mrb[0].mxu0
      %v949 = vadd.f32 0.0, %v948
      %v950 = vpop.f32.mrb[0].mxu0
      %951 = vdwg.mxu0
      %952 = vxpose.xlu0.b32.start [1/16] %v827, 128
      %953 = vxpose.xlu0.b32.cont [2/16] %v828, 128
      %954 = vxpose.xlu0.b32.cont [3/16] 0.0, 128
      %955 = vxpose.xlu0.b32.cont [4/16] 0.0, 128
      %956 = vxpose.xlu0.b32.cont [5/16] 0.0, 128
      %957 = vxpose.xlu0.b32.cont [6/16] 0.0, 128
      %958 = vxpose.xlu0.b32.cont [7/16] 0.0, 128
      %959 = vxpose.xlu0.b32.cont [8/16] 0.0, 128
      %960 = vxpose.xlu0.b32.cont [9/16] 0.0, 128
      %961 = vxpose.xlu0.b32.cont [10/16] 0.0, 128
      %962 = vxpose.xlu0.b32.cont [11/16] 0.0, 128
      %963 = vxpose.xlu0.b32.cont [12/16] 0.0, 128
      %964 = vxpose.xlu0.b32.cont [13/16] 0.0, 128
      %965 = vxpose.xlu0.b32.cont [14/16] 0.0, 128
      %966 = vxpose.xlu0.b32.cont [15/16] 0.0, 128
      %967 = vxpose.xlu0.b32.end [16/16] 0.0, 128
      %v968 = vpop.trf.xlu0
      %v969 = vpop.trf.xlu0
      %v970 = vpop.trf.xlu0
      %v971 = vpop.trf.xlu0
      %v972 = vpop.trf.xlu0
      %v973 = vpop.trf.xlu0
      %v974 = vpop.trf.xlu0
      %v975 = vpop.trf.xlu0
      %v976 = vpop.trf.xlu0
      %v977 = vpop.trf.xlu0
      %v978 = vpop.trf.xlu0
      %v979 = vpop.trf.xlu0
      %v980 = vpop.trf.xlu0
      %v981 = vpop.trf.xlu0
      %v982 = vpop.trf.xlu0
      %v983 = vpop.trf.xlu0
      %984 = vrot.lane.b32.xlu0 %v392, 96
      %v985 = vpop.permute.xlu0 %984
      %986 = vrot.lane.b32.xlu0 %v397, 96
      %v987 = vpop.permute.xlu0 %986
      %v991 = vsel %vm744, %v968, 0
      %v994 = vsel %vm744, %v969, 0
      %996 = vmatprep.subr.mxu0 0.0
      %997 = vmatpush1.msra.mxu0 %v985
      %998 = vmatprep.subr.mxu0 0.0
      %999 = vmatpush1.msra.mxu0 %v987
      %1000 = vmatprep.subr.mxu0 0.0
      %1001 = vmatpush1.msra.mxu0 0.0
      %1002 = vmatprep.subr.mxu0 0.0
      %1003 = vmatpush1.msra.mxu0 0.0
      %1004 = vmatprep.subr.mxu0 0.0
      %1005 = vmatpush1.msra.mxu0 0.0
      %1006 = vmatprep.subr.mxu0 0.0
      %1007 = vmatpush1.msra.mxu0 0.0
      %1008 = vmatprep.subr.mxu0 0.0
      %1009 = vmatpush1.msra.mxu0 0.0
      %1010 = vmatprep.subr.mxu0 0.0
      %1011 = vmatpush1.msra.mxu0 0.0
      %1012 = vmatprep.subr.mxu0 0.0
      %1013 = vmatpush1.msra.mxu0 0.0
      %1014 = vmatprep.subr.mxu0 0.0
      %1015 = vmatpush1.msra.mxu0 0.0
      %1016 = vmatprep.subr.mxu0 0.0
      %1017 = vmatpush1.msra.mxu0 0.0
      %1018 = vmatprep.subr.mxu0 0.0
      %1019 = vmatpush1.msra.mxu0 0.0
      %1020 = vmatprep.subr.mxu0 0.0
      %1021 = vmatpush1.msra.mxu0 0.0
      %1022 = vmatprep.subr.mxu0 0.0
      %1023 = vmatpush1.msra.mxu0 0.0
      %1024 = vmatprep.subr.mxu0 0.0
      %1025 = vmatpush1.msra.mxu0 0.0
      %1026 = vmatprep.subr.mxu0 0.0
      %1027 = vmatpush1.msra.mxu0 0.0
      %1028 = vmatprep.subr.mxu0 0.0
      %1029 = vmatpush1.msra.mxu0 0.0
      %1030 = vmatprep.subr.mxu0 0.0
      %1031 = vmatpush1.msra.mxu0 0.0
      %1032 = vmatprep.subr.mxu0 0.0
      %1033 = vmatpush1.msra.mxu0 0.0
      %1034 = vmatprep.subr.mxu0 0.0
      %1035 = vmatpush1.msra.mxu0 0.0
      %1036 = vmatprep.subr.mxu0 0.0
      %1037 = vmatpush1.msra.mxu0 0.0
      %1038 = vmatprep.subr.mxu0 0.0
      %1039 = vmatpush1.msra.mxu0 0.0
      %1040 = vmatprep.subr.mxu0 0.0
      %1041 = vmatpush1.msra.mxu0 0.0
      %1042 = vmatprep.subr.mxu0 0.0
      %1043 = vmatpush1.msra.mxu0 0.0
      %1044 = vmatprep.subr.mxu0 0.0
      %1045 = vmatpush1.msra.mxu0 0.0
      %1046 = vmatprep.subr.mxu0 0.0
      %1047 = vmatpush1.msra.mxu0 0.0
      %1048 = vmatprep.subr.mxu0 0.0
      %1049 = vmatpush1.msra.mxu0 0.0
      %1050 = vmatprep.subr.mxu0 0.0
      %1051 = vmatpush1.msra.mxu0 0.0
      %1052 = vmatprep.subr.mxu0 0.0
      %1053 = vmatpush1.msra.mxu0 0.0
      %1054 = vmatprep.subr.mxu0 0.0
      %1055 = vmatpush1.msra.mxu0 0.0
      %1056 = vmatprep.subr.mxu0 0.0
      %1057 = vmatpush1.msra.mxu0 0.0
      %1058 = vmatprep.subr.mxu0 0.0
      %1059 = vmatpush1.msra.mxu0 0.0
      %1060 = vmatprep.mubr.f32.mxu0 0.0
      %1061 = vmatmul.mubr.f32.gmra.mrb[0].mxu0 %v991
      %v1062 = vpop.f32.mrb[0].mxu0
      %v1063 = vadd.f32 0.0, %v1062
      %v1064 = vpop.f32.mrb[0].mxu0
      %1065 = vmatprep.mubr.f32.mxu0 0.0
      %1066 = vmatmul.mubr.f32.gmra.mrb[0].mxu0 %v994
      %v1067 = vpop.f32.mrb[0].mxu0
      %v1068 = vadd.f32 0.0, %v1067
      %v1069 = vpop.f32.mrb[0].mxu0
      %1070 = vdwg.mxu0
      %1071 = vxpose.xlu0.b32.start [1/16] %v829, 128
      %1072 = vxpose.xlu0.b32.cont [2/16] %v830, 128
      %1073 = vxpose.xlu0.b32.cont [3/16] 0.0, 128
      %1074 = vxpose.xlu0.b32.cont [4/16] 0.0, 128
      %1075 = vxpose.xlu0.b32.cont [5/16] 0.0, 128
      %1076 = vxpose.xlu0.b32.cont [6/16] 0.0, 128
      %1077 = vxpose.xlu0.b32.cont [7/16] 0.0, 128
      %1078 = vxpose.xlu0.b32.cont [8/16] 0.0, 128
      %1079 = vxpose.xlu0.b32.cont [9/16] 0.0, 128
      %1080 = vxpose.xlu0.b32.cont [10/16] 0.0, 128
      %1081 = vxpose.xlu0.b32.cont [11/16] 0.0, 128
      %1082 = vxpose.xlu0.b32.cont [12/16] 0.0, 128
      %1083 = vxpose.xlu0.b32.cont [13/16] 0.0, 128
      %1084 = vxpose.xlu0.b32.cont [14/16] 0.0, 128
      %1085 = vxpose.xlu0.b32.cont [15/16] 0.0, 128
      %1086 = vxpose.xlu0.b32.end [16/16] 0.0, 128
      %v1087 = vpop.trf.xlu0
      %v1088 = vpop.trf.xlu0
      %v1089 = vpop.trf.xlu0
      %v1090 = vpop.trf.xlu0
      %v1091 = vpop.trf.xlu0
      %v1092 = vpop.trf.xlu0
      %v1093 = vpop.trf.xlu0
      %v1094 = vpop.trf.xlu0
      %v1095 = vpop.trf.xlu0
      %v1096 = vpop.trf.xlu0
      %v1097 = vpop.trf.xlu0
      %v1098 = vpop.trf.xlu0
      %v1099 = vpop.trf.xlu0
      %v1100 = vpop.trf.xlu0
      %v1101 = vpop.trf.xlu0
      %v1102 = vpop.trf.xlu0
      %1103 = vrot.lane.b32.xlu0 %v402, 96
      %v1104 = vpop.permute.xlu0 %1103
      %1105 = vrot.lane.b32.xlu0 %v407, 96
      %v1106 = vpop.permute.xlu0 %1105
      %v1110 = vsel %vm744, %v1087, 0
      %v1113 = vsel %vm744, %v1088, 0
      %1115 = vmatprep.subr.mxu0 0.0
      %1116 = vmatpush1.msra.mxu0 %v1104
      %1117 = vmatprep.subr.mxu0 0.0
      %1118 = vmatpush1.msra.mxu0 %v1106
      %1119 = vmatprep.subr.mxu0 0.0
      %1120 = vmatpush1.msra.mxu0 0.0
      %1121 = vmatprep.subr.mxu0 0.0
      %1122 = vmatpush1.msra.mxu0 0.0
      %1123 = vmatprep.subr.mxu0 0.0
      %1124 = vmatpush1.msra.mxu0 0.0
      %1125 = vmatprep.subr.mxu0 0.0
      %1126 = vmatpush1.msra.mxu0 0.0
      %1127 = vmatprep.subr.mxu0 0.0
      %1128 = vmatpush1.msra.mxu0 0.0
      %1129 = vmatprep.subr.mxu0 0.0
      %1130 = vmatpush1.msra.mxu0 0.0
      %1131 = vmatprep.subr.mxu0 0.0
      %1132 = vmatpush1.msra.mxu0 0.0
      %1133 = vmatprep.subr.mxu0 0.0
      %1134 = vmatpush1.msra.mxu0 0.0
      %1135 = vmatprep.subr.mxu0 0.0
      %1136 = vmatpush1.msra.mxu0 0.0
      %1137 = vmatprep.subr.mxu0 0.0
      %1138 = vmatpush1.msra.mxu0 0.0
      %1139 = vmatprep.subr.mxu0 0.0
      %1140 = vmatpush1.msra.mxu0 0.0
      %1141 = vmatprep.subr.mxu0 0.0
      %1142 = vmatpush1.msra.mxu0 0.0
      %1143 = vmatprep.subr.mxu0 0.0
      %1144 = vmatpush1.msra.mxu0 0.0
      %1145 = vmatprep.subr.mxu0 0.0
      %1146 = vmatpush1.msra.mxu0 0.0
      %1147 = vmatprep.subr.mxu0 0.0
      %1148 = vmatpush1.msra.mxu0 0.0
      %1149 = vmatprep.subr.mxu0 0.0
      %1150 = vmatpush1.msra.mxu0 0.0
      %1151 = vmatprep.subr.mxu0 0.0
      %1152 = vmatpush1.msra.mxu0 0.0
      %1153 = vmatprep.subr.mxu0 0.0
      %1154 = vmatpush1.msra.mxu0 0.0
      %1155 = vmatprep.subr.mxu0 0.0
      %1156 = vmatpush1.msra.mxu0 0.0
      %1157 = vmatprep.subr.mxu0 0.0
      %1158 = vmatpush1.msra.mxu0 0.0
      %1159 = vmatprep.subr.mxu0 0.0
      %1160 = vmatpush1.msra.mxu0 0.0
      %1161 = vmatprep.subr.mxu0 0.0
      %1162 = vmatpush1.msra.mxu0 0.0
      %1163 = vmatprep.subr.mxu0 0.0
      %1164 = vmatpush1.msra.mxu0 0.0
      %1165 = vmatprep.subr.mxu0 0.0
      %1166 = vmatpush1.msra.mxu0 0.0
      %1167 = vmatprep.subr.mxu0 0.0
      %1168 = vmatpush1.msra.mxu0 0.0
      %1169 = vmatprep.subr.mxu0 0.0
      %1170 = vmatpush1.msra.mxu0 0.0
      %1171 = vmatprep.subr.mxu0 0.0
      %1172 = vmatpush1.msra.mxu0 0.0
      %1173 = vmatprep.subr.mxu0 0.0
      %1174 = vmatpush1.msra.mxu0 0.0
      %1175 = vmatprep.subr.mxu0 0.0
      %1176 = vmatpush1.msra.mxu0 0.0
      %1177 = vmatprep.subr.mxu0 0.0
      %1178 = vmatpush1.msra.mxu0 0.0
      %1179 = vmatprep.mubr.f32.mxu0 0.0
      %1180 = vmatmul.mubr.f32.gmra.mrb[0].mxu0 %v1110
      %v1181 = vpop.f32.mrb[0].mxu0
      %v1182 = vadd.f32 0.0, %v1181
      %v1183 = vpop.f32.mrb[0].mxu0
      %1184 = vmatprep.mubr.f32.mxu0 0.0
      %1185 = vmatmul.mubr.f32.gmra.mrb[0].mxu0 %v1113
      %v1186 = vpop.f32.mrb[0].mxu0
      %v1187 = vadd.f32 0.0, %v1186
      %v1188 = vpop.f32.mrb[0].mxu0
      %1189 = vdwg.mxu0
      %1190 = vxpose.xlu0.b32.start [1/16] %v831, 128
      %1191 = vxpose.xlu0.b32.cont [2/16] %v832, 128
      %1192 = vxpose.xlu0.b32.cont [3/16] 0.0, 128
      %1193 = vxpose.xlu0.b32.cont [4/16] 0.0, 128
      %1194 = vxpose.xlu0.b32.cont [5/16] 0.0, 128
      %1195 = vxpose.xlu0.b32.cont [6/16] 0.0, 128
      %1196 = vxpose.xlu0.b32.cont [7/16] 0.0, 128
      %1197 = vxpose.xlu0.b32.cont [8/16] 0.0, 128
      %1198 = vxpose.xlu0.b32.cont [9/16] 0.0, 128
      %1199 = vxpose.xlu0.b32.cont [10/16] 0.0, 128
      %1200 = vxpose.xlu0.b32.cont [11/16] 0.0, 128
      %1201 = vxpose.xlu0.b32.cont [12/16] 0.0, 128
      %1202 = vxpose.xlu0.b32.cont [13/16] 0.0, 128
      %1203 = vxpose.xlu0.b32.cont [14/16] 0.0, 128
      %1204 = vxpose.xlu0.b32.cont [15/16] 0.0, 128
      %1205 = vxpose.xlu0.b32.end [16/16] 0.0, 128
      %v1206 = vpop.trf.xlu0
      %v1207 = vpop.trf.xlu0
      %v1208 = vpop.trf.xlu0
      %v1209 = vpop.trf.xlu0
      %v1210 = vpop.trf.xlu0
      %v1211 = vpop.trf.xlu0
      %v1212 = vpop.trf.xlu0
      %v1213 = vpop.trf.xlu0
      %v1214 = vpop.trf.xlu0
      %v1215 = vpop.trf.xlu0
      %v1216 = vpop.trf.xlu0
      %v1217 = vpop.trf.xlu0
      %v1218 = vpop.trf.xlu0
      %v1219 = vpop.trf.xlu0
      %v1220 = vpop.trf.xlu0
      %v1221 = vpop.trf.xlu0
      %1222 = vrot.lane.b32.xlu0 %v412, 96
      %v1223 = vpop.permute.xlu0 %1222
      %1224 = vrot.lane.b32.xlu0 %v417, 96
      %v1225 = vpop.permute.xlu0 %1224
      %v1229 = vsel %vm744, %v1206, 0
      %v1232 = vsel %vm744, %v1207, 0
      %1234 = vmatprep.subr.mxu0 0.0
      %1235 = vmatpush1.msra.mxu0 %v1223
      %1236 = vmatprep.subr.mxu0 0.0
      %1237 = vmatpush1.msra.mxu0 %v1225
      %1238 = vmatprep.subr.mxu0 0.0
      %1239 = vmatpush1.msra.mxu0 0.0
      %1240 = vmatprep.subr.mxu0 0.0
      %1241 = vmatpush1.msra.mxu0 0.0
      %1242 = vmatprep.subr.mxu0 0.0
      %1243 = vmatpush1.msra.mxu0 0.0
      %1244 = vmatprep.subr.mxu0 0.0
      %1245 = vmatpush1.msra.mxu0 0.0
      %1246 = vmatprep.subr.mxu0 0.0
      %1247 = vmatpush1.msra.mxu0 0.0
      %1248 = vmatprep.subr.mxu0 0.0
      %1249 = vmatpush1.msra.mxu0 0.0
      %1250 = vmatprep.subr.mxu0 0.0
      %1251 = vmatpush1.msra.mxu0 0.0
      %1252 = vmatprep.subr.mxu0 0.0
      %1253 = vmatpush1.msra.mxu0 0.0
      %1254 = vmatprep.subr.mxu0 0.0
      %1255 = vmatpush1.msra.mxu0 0.0
      %1256 = vmatprep.subr.mxu0 0.0
      %1257 = vmatpush1.msra.mxu0 0.0
      %1258 = vmatprep.subr.mxu0 0.0
      %1259 = vmatpush1.msra.mxu0 0.0
      %1260 = vmatprep.subr.mxu0 0.0
      %1261 = vmatpush1.msra.mxu0 0.0
      %1262 = vmatprep.subr.mxu0 0.0
      %1263 = vmatpush1.msra.mxu0 0.0
      %1264 = vmatprep.subr.mxu0 0.0
      %1265 = vmatpush1.msra.mxu0 0.0
      %1266 = vmatprep.subr.mxu0 0.0
      %1267 = vmatpush1.msra.mxu0 0.0
      %1268 = vmatprep.subr.mxu0 0.0
      %1269 = vmatpush1.msra.mxu0 0.0
      %1270 = vmatprep.subr.mxu0 0.0
      %1271 = vmatpush1.msra.mxu0 0.0
      %1272 = vmatprep.subr.mxu0 0.0
      %1273 = vmatpush1.msra.mxu0 0.0
      %1274 = vmatprep.subr.mxu0 0.0
      %1275 = vmatpush1.msra.mxu0 0.0
      %1276 = vmatprep.subr.mxu0 0.0
      %1277 = vmatpush1.msra.mxu0 0.0
      %1278 = vmatprep.subr.mxu0 0.0
      %1279 = vmatpush1.msra.mxu0 0.0
      %1280 = vmatprep.subr.mxu0 0.0
      %1281 = vmatpush1.msra.mxu0 0.0
      %1282 = vmatprep.subr.mxu0 0.0
      %1283 = vmatpush1.msra.mxu0 0.0
      %1284 = vmatprep.subr.mxu0 0.0
      %1285 = vmatpush1.msra.mxu0 0.0
      %1286 = vmatprep.subr.mxu0 0.0
      %1287 = vmatpush1.msra.mxu0 0.0
      %1288 = vmatprep.subr.mxu0 0.0
      %1289 = vmatpush1.msra.mxu0 0.0
      %1290 = vmatprep.subr.mxu0 0.0
      %1291 = vmatpush1.msra.mxu0 0.0
      %1292 = vmatprep.subr.mxu0 0.0
      %1293 = vmatpush1.msra.mxu0 0.0
      %1294 = vmatprep.subr.mxu0 0.0
      %1295 = vmatpush1.msra.mxu0 0.0
      %1296 = vmatprep.subr.mxu0 0.0
      %1297 = vmatpush1.msra.mxu0 0.0
      %1298 = vmatprep.mubr.f32.mxu0 0.0
      %1299 = vmatmul.mubr.f32.gmra.mrb[0].mxu0 %v1229
      %v1300 = vpop.f32.mrb[0].mxu0
      %v1301 = vadd.f32 0.0, %v1300
      %v1302 = vpop.f32.mrb[0].mxu0
      %1303 = vmatprep.mubr.f32.mxu0 0.0
      %1304 = vmatmul.mubr.f32.gmra.mrb[0].mxu0 %v1232
      %v1305 = vpop.f32.mrb[0].mxu0
      %v1306 = vadd.f32 0.0, %v1305
      %v1307 = vpop.f32.mrb[0].mxu0
      %1308 = vdwg.mxu0
      %v1309 = vadd.f32 %v944, 1e-09
      %v1310 = vadd.f32 %v949, 1e-09
      %v1311 = vadd.f32 %v1063, 1e-09
      %v1312 = vadd.f32 %v1068, 1e-09
      %v1313 = vadd.f32 %v1182, 1e-09
      %v1314 = vadd.f32 %v1187, 1e-09
      %v1315 = vadd.f32 %v1301, 1e-09
      %v1316 = vadd.f32 %v1306, 1e-09
      %v1317 = vrcp.pop %v1309
      %v1318 = vrcp.pop %v1310
      %v1319 = vrcp.pop %v1311
      %v1320 = vrcp.pop %v1312
      %v1321 = vrcp.pop %v1313
      %v1322 = vrcp.pop %v1314
      %v1323 = vrcp.pop %v1315
      %v1324 = vrcp.pop %v1316
      %1326 = vset.pattern.permute.xlu0 32
      %1327 = vperm.xlu0 %1326, %v1317
      %v1328 = vpop.permute.xlu0 %1327
      %1331 = vset.pattern.permute.xlu0 32
      %1332 = vperm.xlu0 %1331, %v1318
      %v1333 = vpop.permute.xlu0 %1332
      %1336 = vset.pattern.permute.xlu0 32
      %1337 = vperm.xlu0 %1336, %v1319
      %v1338 = vpop.permute.xlu0 %1337
      %1341 = vset.pattern.permute.xlu0 32
      %1342 = vperm.xlu0 %1341, %v1320
      %v1343 = vpop.permute.xlu0 %1342
      %1346 = vset.pattern.permute.xlu0 32
      %1347 = vperm.xlu0 %1346, %v1321
      %v1348 = vpop.permute.xlu0 %1347
      %1351 = vset.pattern.permute.xlu0 32
      %1352 = vperm.xlu0 %1351, %v1322
      %v1353 = vpop.permute.xlu0 %1352
      %1356 = vset.pattern.permute.xlu0 32
      %1357 = vperm.xlu0 %1356, %v1323
      %v1358 = vpop.permute.xlu0 %1357
      %1361 = vset.pattern.permute.xlu0 32
      %1362 = vperm.xlu0 %1361, %v1324
      %v1363 = vpop.permute.xlu0 %1362
      %v1365 = vmul.f32 %v944, %v1328
      %v1366 = vmul.f32 %v949, %v1333
      %v1367 = vmul.f32 %v1063, %v1338
      %v1368 = vmul.f32 %v1068, %v1343
      %v1369 = vmul.f32 %v1182, %v1348
      %v1370 = vmul.f32 %v1187, %v1353
      %v1371 = vmul.f32 %v1301, %v1358
      %v1372 = vmul.f32 %v1306, %v1363
      %v1373 = vld [vmem:[%s3] sm:$0xff]
      %v1374 = vld [vmem:[%s3 + $0x8] sm:$0xff]
      %v1375 = vld [vmem:[%s3 + $0x10] sm:$0xff]
      %v1376 = vld [vmem:[%s3 + $0x18] sm:$0xff]
      %v1377 = vld [vmem:[%s4] sm:$0x1]
      %v1379 = vlaneseq
      %v1380 = vshrl.u32 %v1379, 7
      %v1381 = vsub.s32 0, %v1380
      %v1382 = vrot.slane %v1377, %v1381
      %v1385 = vsel %vm290, %v1365, 0
      %v1388 = vsel %vm290, %v1366, 0
      %v1391 = vsel %vm290, %v1367, 0
      %v1394 = vsel %vm290, %v1368, 0
      %v1397 = vsel %vm290, %v1369, 0
      %v1400 = vsel %vm290, %v1370, 0
      %v1403 = vsel %vm290, %v1371, 0
      %v1406 = vsel %vm290, %v1372, 0
      %1408 = vmatprep.subr.mxu0 0.0
      %1409 = vmatpush1.msra.mxu0 %v1373
      %1410 = vmatprep.subr.mxu0 0.0
      %1411 = vmatpush1.msra.mxu0 %v1374
      %1412 = vmatprep.subr.mxu0 0.0
      %1413 = vmatpush1.msra.mxu0 %v1375
      %1414 = vmatprep.subr.mxu0 0.0
      %1415 = vmatpush1.msra.mxu0 %v1376
      %1416 = vmatprep.subr.mxu0 0.0
      %1417 = vmatpush1.msra.mxu0 0.0
      %1418 = vmatprep.subr.mxu0 0.0
      %1419 = vmatpush1.msra.mxu0 0.0
      %1420 = vmatprep.subr.mxu0 0.0
      %1421 = vmatpush1.msra.mxu0 0.0
      %1422 = vmatprep.subr.mxu0 0.0
      %1423 = vmatpush1.msra.mxu0 0.0
      %1424 = vmatprep.subr.mxu0 0.0
      %1425 = vmatpush1.msra.mxu0 0.0
      %1426 = vmatprep.subr.mxu0 0.0
      %1427 = vmatpush1.msra.mxu0 0.0
      %1428 = vmatprep.subr.mxu0 0.0
      %1429 = vmatpush1.msra.mxu0 0.0
      %1430 = vmatprep.subr.mxu0 0.0
      %1431 = vmatpush1.msra.mxu0 0.0
      %1432 = vmatprep.subr.mxu0 0.0
      %1433 = vmatpush1.msra.mxu0 0.0
      %1434 = vmatprep.subr.mxu0 0.0
      %1435 = vmatpush1.msra.mxu0 0.0
      %1436 = vmatprep.subr.mxu0 0.0
      %1437 = vmatpush1.msra.mxu0 0.0
      %1438 = vmatprep.subr.mxu0 0.0
      %1439 = vmatpush1.msra.mxu0 0.0
      %1440 = vmatprep.subr.mxu0 0.0
      %1441 = vmatpush1.msra.mxu0 0.0
      %1442 = vmatprep.subr.mxu0 0.0
      %1443 = vmatpush1.msra.mxu0 0.0
      %1444 = vmatprep.subr.mxu0 0.0
      %1445 = vmatpush1.msra.mxu0 0.0
      %1446 = vmatprep.subr.mxu0 0.0
      %1447 = vmatpush1.msra.mxu0 0.0
      %1448 = vmatprep.subr.mxu0 0.0
      %1449 = vmatpush1.msra.mxu0 0.0
      %1450 = vmatprep.subr.mxu0 0.0
      %1451 = vmatpush1.msra.mxu0 0.0
      %1452 = vmatprep.subr.mxu0 0.0
      %1453 = vmatpush1.msra.mxu0 0.0
      %1454 = vmatprep.subr.mxu0 0.0
      %1455 = vmatpush1.msra.mxu0 0.0
      %1456 = vmatprep.subr.mxu0 0.0
      %1457 = vmatpush1.msra.mxu0 0.0
      %1458 = vmatprep.subr.mxu0 0.0
      %1459 = vmatpush1.msra.mxu0 0.0
      %1460 = vmatprep.subr.mxu0 0.0
      %1461 = vmatpush1.msra.mxu0 0.0
      %1462 = vmatprep.subr.mxu0 0.0
      %1463 = vmatpush1.msra.mxu0 0.0
      %1464 = vmatprep.subr.mxu0 0.0
      %1465 = vmatpush1.msra.mxu0 0.0
      %1466 = vmatprep.subr.mxu0 0.0
      %1467 = vmatpush1.msra.mxu0 0.0
      %1468 = vmatprep.subr.mxu0 0.0
      %1469 = vmatpush1.msra.mxu0 0.0
      %1470 = vmatprep.subr.mxu0 0.0
      %1471 = vmatpush1.msra.mxu0 0.0
      %1472 = vmatprep.mubr.f32.mxu0 0.0
      %1473 = vmatmul.mubr.f32.gmra.mrb[0].mxu0 %v1385
      %v1474 = vpop.f32.mrb[0].mxu0
      %v1475 = vadd.f32 %v1382, %v1474
      %v1476 = vpop.f32.mrb[0].mxu0
      %1477 = vmatprep.mubr.f32.mxu0 0.0
      %1478 = vmatmul.mubr.f32.gmra.mrb[0].mxu0 %v1388
      %v1479 = vpop.f32.mrb[0].mxu0
      %v1480 = vadd.f32 %v1382, %v1479
      %v1481 = vpop.f32.mrb[0].mxu0
      %1482 = vmatprep.mubr.f32.mxu0 0.0
      %1483 = vmatmul.mubr.f32.gmra.mrb[0].mxu0 %v1391
      %v1484 = vpop.f32.mrb[0].mxu0
      %v1485 = vadd.f32 %v1382, %v1484
      %v1486 = vpop.f32.mrb[0].mxu0
      %1487 = vmatprep.mubr.f32.mxu0 0.0
      %1488 = vmatmul.mubr.f32.gmra.mrb[0].mxu0 %v1394
      %v1489 = vpop.f32.mrb[0].mxu0
      %v1490 = vadd.f32 %v1382, %v1489
      %v1491 = vpop.f32.mrb[0].mxu0
      %1492 = vmatprep.mubr.f32.mxu0 0.0
      %1493 = vmatmul.mubr.f32.gmra.mrb[0].mxu0 %v1397
      %v1494 = vpop.f32.mrb[0].mxu0
      %v1495 = vadd.f32 %v1382, %v1494
      %v1496 = vpop.f32.mrb[0].mxu0
      %1497 = vmatprep.mubr.f32.mxu0 0.0
      %1498 = vmatmul.mubr.f32.gmra.mrb[0].mxu0 %v1400
      %v1499 = vpop.f32.mrb[0].mxu0
      %v1500 = vadd.f32 %v1382, %v1499
      %v1501 = vpop.f32.mrb[0].mxu0
      %1502 = vmatprep.mubr.f32.mxu0 0.0
      %1503 = vmatmul.mubr.f32.gmra.mrb[0].mxu0 %v1403
      %v1504 = vpop.f32.mrb[0].mxu0
      %v1505 = vadd.f32 %v1382, %v1504
      %v1506 = vpop.f32.mrb[0].mxu0
      %1507 = vmatprep.mubr.f32.mxu0 0.0
      %1508 = vmatmul.mubr.f32.gmra.mrb[0].mxu0 %v1406
      %v1509 = vpop.f32.mrb[0].mxu0
      %v1510 = vadd.f32 %v1382, %v1509
      %v1511 = vpop.f32.mrb[0].mxu0
      %1512 = vdwg.mxu0
      %1513 = vst.msk [vmem:[%s265] sm:$0xff] %vm290, %v1475
      %1514 = vst.msk [vmem:[%s265 + $0x8] sm:$0xff] %vm290, %v1480
      %1515 = vst.msk [vmem:[%s265 + $0x10] sm:$0xff] %vm290, %v1485
      %1516 = vst.msk [vmem:[%s265 + $0x18] sm:$0xff] %vm290, %v1490
      %1517 = vst.msk [vmem:[%s265 + $0x20] sm:$0xff] %vm290, %v1495
      %1518 = vst.msk [vmem:[%s265 + $0x28] sm:$0xff] %vm290, %v1500
      %1519 = vst.msk [vmem:[%s265 + $0x30] sm:$0xff] %vm290, %v1505
      %1520 = vst.msk [vmem:[%s265 + $0x38] sm:$0xff] %vm290, %v1510
      %v1521 = vsel %vm290, %v1475, 0.0
      %v1522 = vsel %vm290, %v1480, 0.0
      %v1523 = vadd.f32 %v1521, %v1522
      %v1524 = vsel %vm290, %v1485, 0.0
      %v1525 = vadd.f32 %v1523, %v1524
      %v1526 = vsel %vm290, %v1490, 0.0
      %v1527 = vadd.f32 %v1525, %v1526
      %v1528 = vsel %vm290, %v1495, 0.0
      %v1529 = vadd.f32 %v1527, %v1528
      %v1530 = vsel %vm290, %v1500, 0.0
      %v1531 = vadd.f32 %v1529, %v1530
      %v1532 = vsel %vm290, %v1505, 0.0
      %v1533 = vadd.f32 %v1531, %v1532
      %v1534 = vsel %vm290, %v1510, 0.0
      %v1535 = vadd.f32 %v1533, %v1534
      %v1536 = vrot.slane %v1535, 4
      %v1537 = vadd.f32 %v1535, %v1536
      %v1538 = vrot.slane %v1537, 2
      %v1539 = vadd.f32 %v1537, %v1538
      %v1540 = vrot.slane %v1539, 1
      %v1541 = vadd.f32 %v1539, %v1540
      %vm1542 = vcmask 253952
      %1543 = vst.msk [vmem:[%s270] sm:$0x1] %vm1542, %v1541
      %v1544 = vmul.f32 %v1475, %v1475
      %v1545 = vmul.f32 %v1480, %v1480
      %v1546 = vmul.f32 %v1485, %v1485
      %v1547 = vmul.f32 %v1490, %v1490
      %v1548 = vmul.f32 %v1495, %v1495
      %v1549 = vmul.f32 %v1500, %v1500
      %v1550 = vmul.f32 %v1505, %v1505
      %v1551 = vmul.f32 %v1510, %v1510
      %v1552 = vsel %vm290, %v1544, 0.0
      %v1553 = vsel %vm290, %v1545, 0.0
      %v1554 = vadd.f32 %v1552, %v1553
      %v1555 = vsel %vm290, %v1546, 0.0
      %v1556 = vadd.f32 %v1554, %v1555
      %v1557 = vsel %vm290, %v1547, 0.0
      %v1558 = vadd.f32 %v1556, %v1557
      %v1559 = vsel %vm290, %v1548, 0.0
      %v1560 = vadd.f32 %v1558, %v1559
      %v1561 = vsel %vm290, %v1549, 0.0
      %v1562 = vadd.f32 %v1560, %v1561
      %v1563 = vsel %vm290, %v1550, 0.0
      %v1564 = vadd.f32 %v1562, %v1563
      %v1565 = vsel %vm290, %v1551, 0.0
      %v1566 = vadd.f32 %v1564, %v1565
      %v1567 = vrot.slane %v1566, 4
      %v1568 = vadd.f32 %v1566, %v1567
      %v1569 = vrot.slane %v1568, 2
      %v1570 = vadd.f32 %v1568, %v1569
      %v1571 = vrot.slane %v1570, 1
      %v1572 = vadd.f32 %v1570, %v1571
      %1573 = vst.msk [vmem:[%s270 + $0x1] sm:$0x1] %vm1542, %v1572
      %s1574 = smul.u32 4, %s18
      %p1575 = scmp.lt.s32.totalorder %s1574, 7
      %s1576 = scalar_select %p1575, %s1574, 7
      %s1577 = smul.addr %s1576, 2
      %s1578 = smul.addr %s1577, 8
      %s1579 = scalar_lea.vmem %s5, %s1578
      %p1580 = scmp.lt.s32.totalorder %s18, 1
      %s1581 = scalar_select %p1580, %s18, 1
      %s1582 = smul.addr %s1581, 2
      %s1583 = scalar_lea.vmem %s6, %s1582
      // Predicated region
      $region41: #{g_transformer_forward.2} parent=39 // pred_check
        %p1584 = pneg %p146
      $region42: #{g_transformer_forward.2} parent=39 // pred_check_branch
        %1586 = sbr.rel (%p1584) target = $region44
      $region43: #{g_transformer_forward.2} parent=39 // pred_region
        %s1587 = smul.u32 4, %s18
      $region44: #{g_transformer_forward.2} parent=39 // pred_fallthru
        _
      // Predicated region
      $region45: #{g_transformer_forward.2} parent=39 // pred_check
        %p1588 = pneg %p172
      $region46: #{g_transformer_forward.2} parent=39 // pred_check_branch
        %1590 = sbr.rel (%p1588) target = $region48
      $region47: #{g_transformer_forward.2} parent=39 // pred_region
        _
      $region48: #{g_transformer_forward.2} parent=39 // pred_fallthru
        _
    $region40: #{g_transformer_forward.2} parent=5 // pred_fallthru
      _
    %p1591 = scmp.le.s32.totalorder 2, %s13
    // Predicated region
    $region49: #{g_transformer_forward.2} parent=5 // pred_check
      %p1592 = pneg %p1591
    $region50: #{g_transformer_forward.2} parent=5 // pred_check_branch
      %1594 = sbr.rel (%p1592) target = $region52
    $region51: #{g_transformer_forward.2} parent=5 // pred_region
      %s1595 = ssub.s32 %s13, 2
      // Predicated region
      $region53: #{g_transformer_forward.2} parent=51 // pred_check
        %p1596 = pneg %p152
      $region54: #{g_transformer_forward.2} parent=51 // pred_check_branch
        %1598 = sbr.rel (%p1596) target = $region56
      $region55: #{g_transformer_forward.2} parent=51 // pred_region
        %s1599 = smul.u32 4, %s19
        %p1600 = scmp.lt.s32.totalorder %s1599, 7
        %s1601 = scalar_select %p1600, %s1599, 7
        %s1602 = smul.addr %s1601, 2
        %s1603 = smul.addr %s1602, 8
        %s1604 = scalar_lea.vmem %s5, %s1603
      $region56: #{g_transformer_forward.2} parent=51 // pred_fallthru
        _
      // Predicated region
      $region57: #{g_transformer_forward.2} parent=51 // pred_check
        %p1605 = pneg %p178
      $region58: #{g_transformer_forward.2} parent=51 // pred_check_branch
        %1607 = sbr.rel (%p1605) target = $region60
      $region59: #{g_transformer_forward.2} parent=51 // pred_region
        %p1608 = scmp.lt.s32.totalorder %s19, 1
        %s1609 = scalar_select %p1608, %s19, 1
        %s1610 = smul.addr %s1609, 2
        %s1611 = scalar_lea.vmem %s6, %s1610
      $region60: #{g_transformer_forward.2} parent=51 // pred_fallthru
        _
    $region52: #{g_transformer_forward.2} parent=5 // pred_fallthru
      _
  $region6: #{g_transformer_forward.2} parent=0 // loop_footer
    %s17 = sadd.s32 1, %s13
  $region7: #{g_transformer_forward.2} parent=0 // loop_footer_branch
    %12 = sbr.rel target = $region3
  $region8: #{g_transformer_forward.2} parent=0 // loop_exit
    _

</llo_original>
